<compile_context>
chip_gen: v6e
topology: v6e:2x2x1
jax: 0.10.0
libtpu: 0.0.40
codegen_flags: <defaults>
</compile_context>

<pallas_src>
import functools

import jax
import jax.numpy as jnp
from jax import lax
from jax.experimental import pallas as pl
from jax.experimental.pallas import tpu as pltpu


# ----------------------------------------------------------------------------
# Kernel: grid = (batch, phase, n_tile); phase 0 accumulates, phase 1 writes out.
# ----------------------------------------------------------------------------
def _psa_kernel(x_ref,
                wq_ref,                       # (1, C)   ch_wq weight row (bias cancels in softmax)
                wv_ref, bv_ref,               # (C, C/2), (1, C/2)
                wz_ref, bz_ref,               # (C/2, C), (1, C)
                lng_ref, lnb_ref,             # (1, C), (1, C)  LayerNorm gamma/beta
                wsq_ref, bsq_ref,             # (C, C/2), (1, C/2)
                wsv_ref, bsv_ref,             # (C, C/2), (1, C/2)
                out_ref,
                m_ref, l_ref, zacc_ref, xsum_ref, cw_ref, v_ref, c0_ref, cache_ref,
                *, inv_n, res, ln_eps, use_cache):
    ph = pl.program_id(1)
    nt = pl.program_id(2)
    n_tiles = pl.num_programs(2)

    # ---------------- phase 0: streaming voxel reductions ----------------------
    @pl.when(ph == 0)
    def _accumulate():
        x_t = x_ref[0]                                     # (C, tn), storage dtype
        if use_cache:
            cache_ref[nt] = x_t                            # reuse in phase 1 (skip 2nd HBM read)

        @pl.when(nt == 0)
        def _init():
            m_ref[...] = jnp.full_like(m_ref, -1e30)
            l_ref[...] = jnp.zeros_like(l_ref)
            zacc_ref[...] = jnp.zeros_like(zacc_ref)
            xsum_ref[...] = jnp.zeros_like(xsum_ref)

        # channel-branch logits: 1xC matvec (ch_wq bias is softmax-shift-invariant).
        wq = jnp.dot(wq_ref[...], x_t, preferred_element_type=jnp.float32)   # (1, tn)

        m_old = m_ref[...]
        m_new = jnp.maximum(m_old, jnp.max(wq, axis=1, keepdims=True))
        alpha = jnp.exp(m_old - m_new)
        p = jnp.exp(wq - m_new)                            # (1, tn) unnormalized softmax
        l_ref[...] = alpha * l_ref[...] + jnp.sum(p, axis=1, keepdims=True)

        # Lane-major voxel reductions on the MXU (contract the lane/voxel axis):
        #   zacc += sum_n x[:, n] * p[n]     xsum += sum_n x[:, n]
        zacc_ref[...] = alpha * zacc_ref[...] + lax.dot_general(
            p.astype(x_t.dtype), x_t, (((1,), (1,)), ((), ())),
            preferred_element_type=jnp.float32)            # (1, C)
        ones_row = jnp.ones((1, x_t.shape[1]), x_t.dtype)
        xsum_ref[...] = xsum_ref[...] + lax.dot_general(
            ones_row, x_t, (((1,), (1,)), ((), ())),
            preferred_element_type=jnp.float32)            # (1, C)
        m_ref[...] = m_new

        @pl.when(nt == n_tiles - 1)
        def _finalize():
            # Once per batch; exact divisions (no approx reciprocal here).
            xp = zacc_ref[...] / l_ref[...]                # (1, C) softmax-weighted mean of x
            xsum = xsum_ref[...]

            # z = ch_wv(x) @ softmax(ch_wq(x)) == xp @ Wv + bv  (projection pushed
            # through the voxel reduction; lane-dense row space, original weight layout).
            z = jnp.dot(xp, wv_ref[...], preferred_element_type=jnp.float32) + bv_ref[...]
            zc = jnp.dot(z, wz_ref[...], preferred_element_type=jnp.float32) + bz_ref[...]
            mu = jnp.mean(zc, axis=1, keepdims=True)
            var = jnp.mean((zc - mu) ** 2, axis=1, keepdims=True)
            zn = (zc - mu) * lax.rsqrt(var + ln_eps)
            cw = jax.nn.sigmoid(zn * lng_ref[...] + lnb_ref[...])      # (1, C) channel gate

            # Row -> column flip for the phase-1 per-channel broadcast via an
            # iota-identity MXU matmul (avoids a (1,C)->(C,1) relayout).
            cdim = cw.shape[1]
            eye = (lax.broadcasted_iota(jnp.int32, (cdim, cdim), 0) ==
                   lax.broadcasted_iota(jnp.int32, (cdim, cdim), 1)).astype(jnp.float32)
            cw_ref[...] = lax.dot_general(eye, cw, (((1,), (1,)), ((), ())),
                                          preferred_element_type=jnp.float32)   # (C, 1)

            # Spatial branch folded into one per-batch row vector:
            #   sq = softmax(Wsq^T (cw * mean_n x) + bsq)   (AdaptiveAvgPool commutes
            #   v  = (Wsv sq) * cw ; c0 = sq . bsv           with the 1x1 conv & gate)
            co_mean = cw * xsum * inv_n                                  # (1, C)
            swq = jnp.dot(co_mean, wsq_ref[...],
                          preferred_element_type=jnp.float32) + bsq_ref[...]   # (1, C/2)
            swq = jnp.exp(swq - jnp.max(swq, axis=1, keepdims=True))
            sq = swq / jnp.sum(swq, axis=1, keepdims=True)               # (1, C/2)
            vsv = lax.dot_general(sq, wsv_ref[...], (((1,), (1,)), ((), ())),
                                  preferred_element_type=jnp.float32)    # (1, C)
            v_ref[...] = vsv * cw
            c0_ref[...] = jnp.sum(sq * bsv_ref[...], axis=1, keepdims=True)    # (1, 1)

    # ------------------------- phase 1: output pass ----------------------------
    @pl.when(ph == 1)
    def _emit():
        if use_cache:
            x_t = cache_ref[nt]
        else:
            x_t = x_ref[0]
        x_f = x_t.astype(jnp.float32)
        ch_out = cw_ref[...] * x_f                                        # (C, tn)
        # per-voxel spatial logit: a single 1xC matvec per tile.
        sz = jnp.dot(v_ref[...].astype(x_t.dtype), x_t,
                     preferred_element_type=jnp.float32) + c0_ref[...]    # (1, tn)
        out = jax.nn.sigmoid(sz) * ch_out
        if res:
            out = out + x_f
        out_ref[0] = out.astype(out_ref.dtype)


# ----------------------------------------------------------------------------
# Wrapper helpers
# ----------------------------------------------------------------------------
def _padded_param_bytes(shape, dtype):
    """Approximate VMEM footprint of a small parameter block ((8,128) tile padding)."""
    if len(shape) == 1:
        rows, lanes = 1, shape[0]
    else:
        rows, lanes = shape[-2], shape[-1]
    rows = -(-rows // 8) * 8
    lanes = -(-lanes // 128) * 128
    lead = 1
    for s in shape[:-2]:
        lead *= s
    return lead * rows * lanes * jnp.dtype(dtype).itemsize


def _pick_tile_n(n, c, itemsize, budget_bytes):
    """Largest lane-aligned divisor of n whose streaming working set fits the budget."""
    if n % 128 != 0:
        return n                                 # small / odd volume: single full tile
    # per streamed column: 2x(in+out) blocks + ~3 f32 in-kernel intermediates + small rows
    per_col = c * (4 * itemsize + 12) + 64
    cap = max(128, budget_bytes // per_col)
    q = n // 128
    best = 1
    for k in range(1, q + 1):
        if q % k == 0 and 128 * k <= cap:
            best = k
    return 128 * best


# ----------------------------------------------------------------------------
# Wrapper
# ----------------------------------------------------------------------------
def sequential_polarized_self_attention(x, params, res=False, tile_n=None,
                                        cache_x=None, vmem_budget_bytes=36 << 20):
    """x: (b, c, h, w, d), dtype float32 or bfloat16.  Mirrors the PyTorch forward."""
    b, c, h, w, d = x.shape
    assert c % 2 == 0
    n = h * w * d
    itemsize = jnp.dtype(x.dtype).itemsize

    if tile_n is None:
        tile_n = _pick_tile_n(n, c, itemsize, vmem_budget_bytes)
    if n % tile_n != 0 or not (tile_n == n or tile_n % 128 == 0):
        raise ValueError(f"tile_n={tile_n} must divide N={n} and be lane aligned")
    n_tiles = n // tile_n

    # NCDHW -> (b, C, N): collapse of contiguous trailing dims, NO transpose.
    x_cn = x.reshape(b, c, n)

    f32 = jnp.float32
    mm_dtype = jnp.bfloat16 if x.dtype == jnp.bfloat16 else f32
    # All parameters as lane-dense rows / original-orientation matrices (no column padding).
    # ch_wq bias is dropped: a constant added to every softmax logit cancels exactly.
    wq_vec = params["ch_wq_w"].reshape(1, c).astype(mm_dtype)
    wv = params["ch_wv_w"].astype(f32)                 # (C, C/2)
    bv = params["ch_wv_b"].reshape(1, -1).astype(f32)  # (1, C/2)
    wz = params["ch_wz_w"].astype(f32)                 # (C/2, C)
    bz = params["ch_wz_b"].reshape(1, -1).astype(f32)  # (1, C)
    lng = params["ln_g"].reshape(1, -1).astype(f32)
    lnb = params["ln_b"].reshape(1, -1).astype(f32)
    wsq = params["sp_wq_w"].astype(f32)                # (C, C/2)
    bsq = params["sp_wq_b"].reshape(1, -1).astype(f32)
    wsv = params["sp_wv_w"].astype(f32)                # (C, C/2)
    bsv = params["sp_wv_b"].reshape(1, -1).astype(f32)
    weights = [wq_vec, wv, bv, wz, bz, lng, lnb, wsq, bsq, wsv, bsv]

    # ----- honest VMEM accounting (blocks, intermediates, padded params, scratch) -----
    blk_bytes = c * tile_n * itemsize
    inter_bytes = 3 * c * tile_n * 4 + 64 * tile_n         # f32 cast + ch_out + f32 out + rows
    param_bytes = sum(_padded_param_bytes(wt.shape, wt.dtype) for wt in weights)
    small_scratch = (c * 128 + 6 * 8 * 128) * 4            # cw column + small row scratch
    stream_bytes = 4 * blk_bytes + inter_bytes + 2 * param_bytes + small_scratch + (2 << 20)

    cache_full = c * n * itemsize                          # whole per-batch volume
    if cache_x is None:
        # Cache x in VMEM only when it saves a full HBM read and still fits everywhere
        # (including v7x's 64 MiB) with comfortable headroom.
        cache_x = (n_tiles > 1) and (stream_bytes + cache_full <= (44 << 20))
    cache_shape = (n_tiles, c, tile_n) if cache_x else (1, 8, 128)
    cache_bytes = cache_full if cache_x else 8 * 128 * itemsize

    vmem_needed = stream_bytes + cache_bytes
    vmem_limit = int(min(max(vmem_needed + (4 << 20), 32 << 20), 128 << 20))

    def wspec(shape):
        return pl.BlockSpec(shape, lambda bi, ph, nt: (0,) * len(shape))

    if cache_x:
        last = n_tiles - 1
        # phase 1 parks x on the last tile (no extra DMA); data comes from the VMEM cache.
        x_index = lambda bi, ph, nt: (bi, 0, nt * (1 - ph) + last * ph)
    else:
        x_index = lambda bi, ph, nt: (bi, 0, nt)
    x_spec = pl.BlockSpec((1, c, tile_n), x_index)

    # Phase 0 parks the output buffer on tile 0; its block index only changes after
    # phase 1 (nt=0) has written it, so the untouched buffer is never flushed to HBM.
    out_spec = pl.BlockSpec((1, c, tile_n), lambda bi, ph, nt: (bi, 0, ph * nt))

    grid_spec = pltpu.PrefetchScalarGridSpec(
        num_scalar_prefetch=0,
        grid=(b, 2, n_tiles),
        in_specs=[x_spec] + [wspec(wt.shape) for wt in weights],
        out_specs=out_spec,
        scratch_shapes=[
            pltpu.VMEM((1, 1), f32),        # m    : running max of channel-softmax logits
            pltpu.VMEM((1, 1), f32),        # l    : running sum of exp
            pltpu.VMEM((1, c), f32),        # zacc : sum_n x[:,n]*exp(wq[n]-m)  (lane-major)
            pltpu.VMEM((1, c), f32),        # xsum : sum_n x[:,n]               (lane-major)
            pltpu.VMEM((c, 1), f32),        # cw   : channel gate column (phase-1 broadcast)
            pltpu.VMEM((1, c), f32),        # v    : folded spatial row (phase-1 matvec lhs)
            pltpu.VMEM((1, 1), f32),        # c0   : folded spatial bias scalar
            pltpu.VMEM(cache_shape, x.dtype),   # optional per-batch x cache
        ],
    )

    out = pl.pallas_call(
        functools.partial(_psa_kernel, inv_n=1.0 / n, res=res,
                          ln_eps=1e-5, use_cache=cache_x),
        out_shape=jax.ShapeDtypeStruct((b, c, n), x.dtype),
        grid_spec=grid_spec,
        compiler_params=pltpu.CompilerParams(
            dimension_semantics=("parallel", "arbitrary", "arbitrary"),
            vmem_limit_bytes=vmem_limit,
        ),
    )(x_cn, *weights)

    return out.reshape(b, c, h, w, d)


# ----------------------------------------------------------------------------
# Pure-JAX f32 reference mirroring the PyTorch forward exactly (verification)
# ----------------------------------------------------------------------------
def _reference(x, p, res=False):
    b, c, h, w, d = x.shape

    def conv1(t, W, bias):  # 1x1x1 Conv3d, W: (Cin, Cout)
        return jnp.einsum("io,bihwd->bohwd", W, t) + bias.reshape(1, -1, 1, 1, 1)

    channel_wv = conv1(x, p["ch_wv_w"], p["ch_wv_b"]).reshape(b, c // 2, -1)
    channel_wq = conv1(x, p["ch_wq_w"], p["ch_wq_b"]).reshape(b, -1, 1)
    channel_wq = jax.nn.softmax(channel_wq, axis=1)
    channel_wz = jnp.matmul(channel_wv, channel_wq)[..., None, None]
    z = conv1(channel_wz, p["ch_wz_w"], p["ch_wz_b"]).reshape(b, c, 1).transpose(0, 2, 1)
    mu = z.mean(-1, keepdims=True)
    var = ((z - mu) ** 2).mean(-1, keepdims=True)
    zn = (z - mu) / jnp.sqrt(var + 1e-5) * p["ln_g"] + p["ln_b"]
    channel_weight = jax.nn.sigmoid(zn).transpose(0, 2, 1).reshape(b, c, 1, 1, 1)
    channel_out = channel_weight * x
    spatial_wv = conv1(channel_out, p["sp_wv_w"], p["sp_wv_b"]).reshape(b, c // 2, -1)
    spatial_wq = conv1(channel_out, p["sp_wq_w"], p["sp_wq_b"]).mean(axis=(2, 3, 4)).reshape(b, 1, c // 2)
    spatial_wq = jax.nn.softmax(spatial_wq, axis=-1)
    spatial_wz = jnp.matmul(spatial_wq, spatial_wv)
    spatial_weight = jax.nn.sigmoid(spatial_wz.reshape(b, 1, h, w, d))
    out = spatial_weight * channel_out
    if res:
        out = out + x
    return out


def _init_params(key, c):
    ks = jax.random.split(key, 10)
    s = 0.1
    return {
        "ch_wv_w": s * jax.random.normal(ks[0], (c, c // 2), jnp.float32),
        "ch_wv_b": s * jax.random.normal(ks[1], (c // 2,), jnp.float32),
        "ch_wq_w": s * jax.random.normal(ks[2], (c, 1), jnp.float32),
        "ch_wq_b": s * jax.random.normal(ks[3], (1,), jnp.float32),
        "ch_wz_w": s * jax.random.normal(ks[4], (c // 2, c), jnp.float32),
        "ch_wz_b": s * jax.random.normal(ks[5], (c,), jnp.float32),
        "ln_g": jnp.ones((c,), jnp.float32),
        "ln_b": jnp.zeros((c,), jnp.float32),
        "sp_wv_w": s * jax.random.normal(ks[6], (c, c // 2), jnp.float32),
        "sp_wv_b": s * jax.random.normal(ks[7], (c // 2,), jnp.float32),
        "sp_wq_w": s * jax.random.normal(ks[8], (c, c // 2), jnp.float32),
        "sp_wq_b": s * jax.random.normal(ks[9], (c // 2,), jnp.float32),
    }


if __name__ == "__main__":
    key = jax.random.PRNGKey(0)
    kx, kp = jax.random.split(key)

    # Small shapes consistent with the module (lane-friendly C, N = h*w*d).
    b, c, h, w, d = 2, 128, 4, 4, 16            # N = 256 -> 2 lane tiles per batch
    x = jax.random.normal(kx, (b, c, h, w, d), jnp.float32)
    params = _init_params(kp, c)

    ref = _reference(x, params, res=False)
    ref_res = _reference(x, params, res=True)

    # 1) f32, explicit N tiling: multi-tile online softmax + VMEM x-cache path
    out = jax.block_until_ready(
        sequential_polarized_self_attention(x, params, res=False, tile_n=128))
    assert out.shape == (b, c, h, w, d)
    assert bool(jnp.allclose(out, ref, atol=1e-2, rtol=1e-2)), "f32 tiled mismatch"

    # 2) f32, multi-tile with the cache disabled (pure streaming path)
    out_nc = jax.block_until_ready(
        sequential_polarized_self_attention(x, params, res=False, tile_n=128,
                                            cache_x=False))
    assert bool(jnp.allclose(out_nc, ref, atol=1e-2, rtol=1e-2)), "no-cache mismatch"

    # 3) residual connection + auto tile size (single-tile path)
    out_r = jax.block_until_ready(
        sequential_polarized_self_attention(x, params, res=True))
    assert bool(jnp.allclose(out_r, ref_res, atol=1e-2, rtol=1e-2)), "res mismatch"

    # 4) bf16 activation streaming (bf16 MXU feeds, f32 VPU/EUP math)
    out_bf = jax.block_until_ready(
        sequential_polarized_self_attention(x.astype(jnp.bfloat16), params,
                                            res=False, tile_n=128))
    assert out_bf.dtype == jnp.bfloat16
    assert bool(jnp.allclose(out_bf.astype(jnp.float32), ref, atol=1e-1, rtol=1e-1)), \
        "bf16 mismatch"

    print("KERNEL_OK")
</pallas_src>

<mosaic_0001>
module attributes {stable_mosaic.version = 11 : i64} {
  func.func @_psa_kernel(%arg0: i32, %arg1: i32, %arg2: i32, %arg3: memref<1x128x128xf32, #tpu.memory_space<vmem>>, %arg4: memref<1x128xf32, #tpu.memory_space<vmem>>, %arg5: memref<128x64xf32, #tpu.memory_space<vmem>>, %arg6: memref<1x64xf32, #tpu.memory_space<vmem>>, %arg7: memref<64x128xf32, #tpu.memory_space<vmem>>, %arg8: memref<1x128xf32, #tpu.memory_space<vmem>>, %arg9: memref<1x128xf32, #tpu.memory_space<vmem>>, %arg10: memref<1x128xf32, #tpu.memory_space<vmem>>, %arg11: memref<128x64xf32, #tpu.memory_space<vmem>>, %arg12: memref<1x64xf32, #tpu.memory_space<vmem>>, %arg13: memref<128x64xf32, #tpu.memory_space<vmem>>, %arg14: memref<1x64xf32, #tpu.memory_space<vmem>>, %arg15: memref<1x128x128xf32, #tpu.memory_space<vmem>>, %arg16: memref<1x1xf32, #tpu.memory_space<vmem>>, %arg17: memref<1x1xf32, #tpu.memory_space<vmem>>, %arg18: memref<1x128xf32, #tpu.memory_space<vmem>>, %arg19: memref<1x128xf32, #tpu.memory_space<vmem>>, %arg20: memref<128x1xf32, #tpu.memory_space<vmem>>, %arg21: memref<1x128xf32, #tpu.memory_space<vmem>>, %arg22: memref<1x1xf32, #tpu.memory_space<vmem>>, %arg23: memref<2x128x128xf32, #tpu.memory_space<vmem>>) attributes {dimension_semantics = [#tpu.dimension_semantics<parallel>, #tpu.dimension_semantics<arbitrary>, #tpu.dimension_semantics<arbitrary>], iteration_bounds = array<i64: 2, 2, 2>, scalar_prefetch = 0 : i64, scratch_operands = 8 : i64, tpu.core_type = #tpu.core_type<tc>, window_params = [{transform_indices = @transform_0, window_bounds = array<i64: 1, 128, 128>}, {pipeline_mode = #tpu.pipeline_mode<synchronous>, transform_indices = @transform_1, window_bounds = array<i64: 1, 128>}, {pipeline_mode = #tpu.pipeline_mode<synchronous>, transform_indices = @transform_2, window_bounds = array<i64: 128, 64>}, {pipeline_mode = #tpu.pipeline_mode<synchronous>, transform_indices = @transform_3, window_bounds = array<i64: 1, 64>}, {pipeline_mode = #tpu.pipeline_mode<synchronous>, transform_indices = @transform_4, window_bounds = array<i64: 64, 128>}, {pipeline_mode = #tpu.pipeline_mode<synchronous>, transform_indices = @transform_5, window_bounds = array<i64: 1, 128>}, {pipeline_mode = #tpu.pipeline_mode<synchronous>, transform_indices = @transform_6, window_bounds = array<i64: 1, 128>}, {pipeline_mode = #tpu.pipeline_mode<synchronous>, transform_indices = @transform_7, window_bounds = array<i64: 1, 128>}, {pipeline_mode = #tpu.pipeline_mode<synchronous>, transform_indices = @transform_8, window_bounds = array<i64: 128, 64>}, {pipeline_mode = #tpu.pipeline_mode<synchronous>, transform_indices = @transform_9, window_bounds = array<i64: 1, 64>}, {pipeline_mode = #tpu.pipeline_mode<synchronous>, transform_indices = @transform_10, window_bounds = array<i64: 128, 64>}, {pipeline_mode = #tpu.pipeline_mode<synchronous>, transform_indices = @transform_11, window_bounds = array<i64: 1, 64>}, {transform_indices = @transform_12, window_bounds = array<i64: 1, 128, 128>}]} {
    %c0_i32 = arith.constant 0 : i32
    %0 = arith.cmpi eq, %arg1, %c0_i32 : i32
    %1 = arith.extui %0 : i1 to i32
    %c0_i32_0 = arith.constant 0 : i32
    %2 = arith.cmpi ne, %1, %c0_i32_0 : i32
    scf.if %2 {
      %c0 = arith.constant 0 : index
      %c0_2 = arith.constant 0 : index
      %c0_3 = arith.constant 0 : index
      %6 = vector.load %arg3[%c0, %c0_2, %c0_3] : memref<1x128x128xf32, #tpu.memory_space<vmem>>, vector<1x128x128xf32>
      %7 = vector.shape_cast %6 : vector<1x128x128xf32> to vector<128x128xf32>
      %8 = arith.index_cast %arg2 : i32 to index
      %c0_4 = arith.constant 0 : index
      %c0_5 = arith.constant 0 : index
      %9 = vector.load %arg23[%8, %c0_4, %c0_5] : memref<2x128x128xf32, #tpu.memory_space<vmem>>, vector<1x128x128xf32>
      %10 = vector.shape_cast %9 : vector<1x128x128xf32> to vector<128x128xf32>
      %11 = vector.shape_cast %7 : vector<128x128xf32> to vector<1x128x128xf32>
      tpu.vector_store %arg23[%8, %c0_4, %c0_5], %11 {strides = array<i32>} : memref<2x128x128xf32, #tpu.memory_space<vmem>>, vector<1x128x128xf32>,
      %c0_i32_6 = arith.constant 0 : i32
      %12 = arith.cmpi eq, %arg2, %c0_i32_6 : i32
      %13 = arith.extui %12 : i1 to i32
      %c0_i32_7 = arith.constant 0 : i32
      %14 = arith.cmpi ne, %13, %c0_i32_7 : i32
      scf.if %14 {
        %cst_33 = arith.constant -1.000000e+30 : f32
        %47 = vector.broadcast %cst_33 : f32 to vector<1x1xf32>
        %c0_34 = arith.constant 0 : index
        %c0_35 = arith.constant 0 : index
        %48 = vector.load %arg16[%c0_34, %c0_35] : memref<1x1xf32, #tpu.memory_space<vmem>>, vector<1x1xf32>
        tpu.vector_store %arg16[%c0_34, %c0_35], %47 {strides = array<i32>} : memref<1x1xf32, #tpu.memory_space<vmem>>, vector<1x1xf32>,
        %cst_36 = arith.constant 0.000000e+00 : f32
        %49 = vector.broadcast %cst_36 : f32 to vector<1x1xf32>
        %c0_37 = arith.constant 0 : index
        %c0_38 = arith.constant 0 : index
        %50 = vector.load %arg17[%c0_37, %c0_38] : memref<1x1xf32, #tpu.memory_space<vmem>>, vector<1x1xf32>
        tpu.vector_store %arg17[%c0_37, %c0_38], %49 {strides = array<i32>} : memref<1x1xf32, #tpu.memory_space<vmem>>, vector<1x1xf32>,
        %cst_39 = arith.constant 0.000000e+00 : f32
        %51 = vector.broadcast %cst_39 : f32 to vector<1x128xf32>
        %c0_40 = arith.constant 0 : index
        %c0_41 = arith.constant 0 : index
        %52 = vector.load %arg18[%c0_40, %c0_41] : memref<1x128xf32, #tpu.memory_space<vmem>>, vector<1x128xf32>
        tpu.vector_store %arg18[%c0_40, %c0_41], %51 {strides = array<i32>} : memref<1x128xf32, #tpu.memory_space<vmem>>, vector<1x128xf32>,
        %cst_42 = arith.constant 0.000000e+00 : f32
        %53 = vector.broadcast %cst_42 : f32 to vector<1x128xf32>
        %c0_43 = arith.constant 0 : index
        %c0_44 = arith.constant 0 : index
        %54 = vector.load %arg19[%c0_43, %c0_44] : memref<1x128xf32, #tpu.memory_space<vmem>>, vector<1x128xf32>
        tpu.vector_store %arg19[%c0_43, %c0_44], %53 {strides = array<i32>} : memref<1x128xf32, #tpu.memory_space<vmem>>, vector<1x128xf32>,
      } else {
      }
      %c0_8 = arith.constant 0 : index
      %c0_9 = arith.constant 0 : index
      %15 = vector.load %arg4[%c0_8, %c0_9] : memref<1x128xf32, #tpu.memory_space<vmem>>, vector<1x128xf32>
      %cst = arith.constant dense<0.000000e+00> : vector<1x128xf32>
      %16 = tpu.matmul %15, %7, %cst {dimension_numbers = #tpu.dot_dimension_numbers<[1], [0], [0], [1], [0, 0, 1, 1], [], []>} : vector<1x128xf32>, vector<128x128xf32>, vector<1x128xf32> -> vector<1x128xf32>
      %c0_10 = arith.constant 0 : index
      %c0_11 = arith.constant 0 : index
      %17 = vector.load %arg16[%c0_10, %c0_11] : memref<1x1xf32, #tpu.memory_space<vmem>>, vector<1x1xf32>
      %cst_12 = arith.constant dense<0xFF800000> : vector<1xf32>
      %18 = vector.multi_reduction <maximumf>, %16, %cst_12 [1] : vector<1x128xf32> to vector<1xf32>
      %19 = vector.shape_cast %18 : vector<1xf32> to vector<1x1xf32>
      %20 = arith.maximumf %17, %19 : vector<1x1xf32>
      %21 = arith.subf %17, %20 : vector<1x1xf32>
      %22 = math.exp %21 : vector<1x1xf32>
      %23 = vector.broadcast %20 : vector<1x1xf32> to vector<1x128xf32>
      %24 = arith.subf %16, %23 : vector<1x128xf32>
      %25 = math.exp %24 : vector<1x128xf32>
      %c0_13 = arith.constant 0 : index
      %c0_14 = arith.constant 0 : index
      %26 = vector.load %arg17[%c0_13, %c0_14] : memref<1x1xf32, #tpu.memory_space<vmem>>, vector<1x1xf32>
      %27 = arith.mulf %22, %26 : vector<1x1xf32>
      %cst_15 = arith.constant dense<0.000000e+00> : vector<1xf32>
      %28 = vector.multi_reduction <add>, %25, %cst_15 [1] : vector<1x128xf32> to vector<1xf32>
      %29 = vector.shape_cast %28 : vector<1xf32> to vector<1x1xf32>
      %30 = arith.addf %27, %29 : vector<1x1xf32>
      %c0_16 = arith.constant 0 : index
      %c0_17 = arith.constant 0 : index
      %31 = vector.load %arg17[%c0_16, %c0_17] : memref<1x1xf32, #tpu.memory_space<vmem>>, vector<1x1xf32>
      tpu.vector_store %arg17[%c0_16, %c0_17], %30 {strides = array<i32>} : memref<1x1xf32, #tpu.memory_space<vmem>>, vector<1x1xf32>,
      %c0_18 = arith.constant 0 : index
      %c0_19 = arith.constant 0 : index
      %32 = vector.load %arg18[%c0_18, %c0_19] : memref<1x128xf32, #tpu.memory_space<vmem>>, vector<1x128xf32>
      %33 = vector.broadcast %22 : vector<1x1xf32> to vector<1x128xf32>
      %34 = arith.mulf %33, %32 : vector<1x128xf32>
      %cst_20 = arith.constant dense<0.000000e+00> : vector<1x128xf32>
      %35 = tpu.matmul %25, %7, %cst_20 {dimension_numbers = #tpu.dot_dimension_numbers<[1], [1], [0], [0], [0, 0, 1, 0], [], []>} : vector<1x128xf32>, vector<128x128xf32>, vector<1x128xf32> -> vector<1x128xf32>
      %36 = arith.addf %34, %35 : vector<1x128xf32>
      %c0_21 = arith.constant 0 : index
      %c0_22 = arith.constant 0 : index
      %37 = vector.load %arg18[%c0_21, %c0_22] : memref<1x128xf32, #tpu.memory_space<vmem>>, vector<1x128xf32>
      tpu.vector_store %arg18[%c0_21, %c0_22], %36 {strides = array<i32>} : memref<1x128xf32, #tpu.memory_space<vmem>>, vector<1x128xf32>,
      %cst_23 = arith.constant 1.000000e+00 : f32
      %38 = vector.broadcast %cst_23 : f32 to vector<1x128xf32>
      %c0_24 = arith.constant 0 : index
      %c0_25 = arith.constant 0 : index
      %39 = vector.load %arg19[%c0_24, %c0_25] : memref<1x128xf32, #tpu.memory_space<vmem>>, vector<1x128xf32>
      %cst_26 = arith.constant dense<0.000000e+00> : vector<1x128xf32>
      %40 = tpu.matmul %38, %7, %cst_26 {dimension_numbers = #tpu.dot_dimension_numbers<[1], [1], [0], [0], [0, 0, 1, 0], [], []>} : vector<1x128xf32>, vector<128x128xf32>, vector<1x128xf32> -> vector<1x128xf32>
      %41 = arith.addf %39, %40 : vector<1x128xf32>
      %c0_27 = arith.constant 0 : index
      %c0_28 = arith.constant 0 : index
      %42 = vector.load %arg19[%c0_27, %c0_28] : memref<1x128xf32, #tpu.memory_space<vmem>>, vector<1x128xf32>
      tpu.vector_store %arg19[%c0_27, %c0_28], %41 {strides = array<i32>} : memref<1x128xf32, #tpu.memory_space<vmem>>, vector<1x128xf32>,
      %c0_29 = arith.constant 0 : index
      %c0_30 = arith.constant 0 : index
      %43 = vector.load %arg16[%c0_29, %c0_30] : memref<1x1xf32, #tpu.memory_space<vmem>>, vector<1x1xf32>
      tpu.vector_store %arg16[%c0_29, %c0_30], %20 {strides = array<i32>} : memref<1x1xf32, #tpu.memory_space<vmem>>, vector<1x1xf32>,
      %c1_i32_31 = arith.constant 1 : i32
      %44 = arith.cmpi eq, %arg2, %c1_i32_31 : i32
      %45 = arith.extui %44 : i1 to i32
      %c0_i32_32 = arith.constant 0 : i32
      %46 = arith.cmpi ne, %45, %c0_i32_32 : i32
      scf.if %46 {
        %c0_33 = arith.constant 0 : index
        %c0_34 = arith.constant 0 : index
        %47 = vector.load %arg18[%c0_33, %c0_34] : memref<1x128xf32, #tpu.memory_space<vmem>>, vector<1x128xf32>
        %c0_35 = arith.constant 0 : index
        %c0_36 = arith.constant 0 : index
        %48 = vector.load %arg17[%c0_35, %c0_36] : memref<1x1xf32, #tpu.memory_space<vmem>>, vector<1x1xf32>
        %49 = vector.broadcast %48 : vector<1x1xf32> to vector<1x128xf32>
        %50 = arith.divf %47, %49 : vector<1x128xf32>
        %c0_37 = arith.constant 0 : index
        %c0_38 = arith.constant 0 : index
        %51 = vector.load %arg19[%c0_37, %c0_38] : memref<1x128xf32, #tpu.memory_space<vmem>>, vector<1x128xf32>
        %c0_39 = arith.constant 0 : index
        %c0_40 = arith.constant 0 : index
        %52 = vector.load %arg5[%c0_39, %c0_40] : memref<128x64xf32, #tpu.memory_space<vmem>>, vector<128x64xf32>
        %cst_41 = arith.constant dense<0.000000e+00> : vector<1x64xf32>
        %53 = tpu.matmul %50, %52, %cst_41 {dimension_numbers = #tpu.dot_dimension_numbers<[1], [0], [0], [1], [0, 0, 1, 1], [], []>} : vector<1x128xf32>, vector<128x64xf32>, vector<1x64xf32> -> vector<1x64xf32>
        %c0_42 = arith.constant 0 : index
        %c0_43 = arith.constant 0 : index
        %54 = vector.load %arg6[%c0_42, %c0_43] : memref<1x64xf32, #tpu.memory_space<vmem>>, vector<1x64xf32>
        %55 = arith.addf %53, %54 : vector<1x64xf32>
        %c0_44 = arith.constant 0 : index
        %c0_45 = arith.constant 0 : index
        %56 = vector.load %arg7[%c0_44, %c0_45] : memref<64x128xf32, #tpu.memory_space<vmem>>, vector<64x128xf32>
        %cst_46 = arith.constant dense<0.000000e+00> : vector<1x128xf32>
        %57 = tpu.matmul %55, %56, %cst_46 {dimension_numbers = #tpu.dot_dimension_numbers<[1], [0], [0], [1], [0, 0, 1, 1], [], []>} : vector<1x64xf32>, vector<64x128xf32>, vector<1x128xf32> -> vector<1x128xf32>
        %c0_47 = arith.constant 0 : index
        %c0_48 = arith.constant 0 : index
        %58 = vector.load %arg8[%c0_47, %c0_48] : memref<1x128xf32, #tpu.memory_space<vmem>>, vector<1x128xf32>
        %59 = arith.addf %57, %58 : vector<1x128xf32>
        %cst_49 = arith.constant dense<0.000000e+00> : vector<1xf32>
        %60 = vector.multi_reduction <add>, %59, %cst_49 [1] : vector<1x128xf32> to vector<1xf32>
        %61 = vector.shape_cast %60 : vector<1xf32> to vector<1x1xf32>
        %cst_50 = arith.constant 1.280000e+02 : f32
        %62 = vector.broadcast %cst_50 : f32 to vector<1x1xf32>
        %63 = arith.divf %61, %62 : vector<1x1xf32>
        %64 = vector.broadcast %63 : vector<1x1xf32> to vector<1x128xf32>
        %65 = arith.subf %59, %64 : vector<1x128xf32>
        %66 = arith.mulf %65, %65 : vector<1x128xf32>
        %cst_51 = arith.constant dense<0.000000e+00> : vector<1xf32>
        %67 = vector.multi_reduction <add>, %66, %cst_51 [1] : vector<1x128xf32> to vector<1xf32>
        %68 = vector.shape_cast %67 : vector<1xf32> to vector<1x1xf32>
        %cst_52 = arith.constant 1.280000e+02 : f32
        %69 = vector.broadcast %cst_52 : f32 to vector<1x1xf32>
        %70 = arith.divf %68, %69 : vector<1x1xf32>
        %71 = vector.broadcast %63 : vector<1x1xf32> to vector<1x128xf32>
        %72 = arith.subf %59, %71 : vector<1x128xf32>
        %cst_53 = arith.constant 9.99999974E-6 : f32
        %73 = vector.broadcast %cst_53 : f32 to vector<1x1xf32>
        %74 = arith.addf %70, %73 : vector<1x1xf32>
        %75 = math.rsqrt %74 : vector<1x1xf32>
        %76 = vector.broadcast %75 : vector<1x1xf32> to vector<1x128xf32>
        %77 = arith.mulf %72, %76 : vector<1x128xf32>
        %c0_54 = arith.constant 0 : index
        %c0_55 = arith.constant 0 : index
        %78 = vector.load %arg9[%c0_54, %c0_55] : memref<1x128xf32, #tpu.memory_space<vmem>>, vector<1x128xf32>
        %79 = arith.mulf %77, %78 : vector<1x128xf32>
        %c0_56 = arith.constant 0 : index
        %c0_57 = arith.constant 0 : index
        %80 = vector.load %arg10[%c0_56, %c0_57] : memref<1x128xf32, #tpu.memory_space<vmem>>, vector<1x128xf32>
        %81 = arith.addf %79, %80 : vector<1x128xf32>
        %82 = arith.negf %81 : vector<1x128xf32>
        %83 = math.exp %82 : vector<1x128xf32>
        %cst_58 = arith.constant 1.000000e+00 : f32
        %84 = vector.broadcast %cst_58 : f32 to vector<1x128xf32>
        %85 = arith.addf %84, %83 : vector<1x128xf32>
        %86 = arith.divf %84, %85 : vector<1x128xf32>
        %87 = tpu.iota {dimensions = array<i32: 0>} : vector<128x128xi32>
        %88 = tpu.iota {dimensions = array<i32: 1>} : vector<128x128xi32>
        %89 = arith.cmpi eq, %87, %88 : vector<128x128xi32>
        %90 = arith.extui %89 : vector<128x128xi1> to vector<128x128xi32>
        %91 = arith.sitofp %90 : vector<128x128xi32> to vector<128x128xf32>
        %cst_59 = arith.constant dense<0.000000e+00> : vector<128x1xf32>
        %92 = tpu.matmul %91, %86, %cst_59 {dimension_numbers = #tpu.dot_dimension_numbers<[1], [1], [0], [0], [0, 0, 1, 0], [], []>} : vector<128x128xf32>, vector<1x128xf32>, vector<128x1xf32> -> vector<128x1xf32>
        %c0_60 = arith.constant 0 : index
        %c0_61 = arith.constant 0 : index
        %93 = vector.load %arg20[%c0_60, %c0_61] : memref<128x1xf32, #tpu.memory_space<vmem>>, vector<128x1xf32>
        tpu.vector_store %arg20[%c0_60, %c0_61], %92 {strides = array<i32>} : memref<128x1xf32, #tpu.memory_space<vmem>>, vector<128x1xf32>,
        %94 = arith.mulf %86, %51 : vector<1x128xf32>
        %cst_62 = arith.constant 3.906250e-03 : f32
        %95 = vector.broadcast %cst_62 : f32 to vector<1x128xf32>
        %96 = arith.mulf %94, %95 : vector<1x128xf32>
        %c0_63 = arith.constant 0 : index
        %c0_64 = arith.constant 0 : index
        %97 = vector.load %arg11[%c0_63, %c0_64] : memref<128x64xf32, #tpu.memory_space<vmem>>, vector<128x64xf32>
        %cst_65 = arith.constant dense<0.000000e+00> : vector<1x64xf32>
        %98 = tpu.matmul %96, %97, %cst_65 {dimension_numbers = #tpu.dot_dimension_numbers<[1], [0], [0], [1], [0, 0, 1, 1], [], []>} : vector<1x128xf32>, vector<128x64xf32>, vector<1x64xf32> -> vector<1x64xf32>
        %c0_66 = arith.constant 0 : index
        %c0_67 = arith.constant 0 : index
        %99 = vector.load %arg12[%c0_66, %c0_67] : memref<1x64xf32, #tpu.memory_space<vmem>>, vector<1x64xf32>
        %100 = arith.addf %98, %99 : vector<1x64xf32>
        %cst_68 = arith.constant dense<0xFF800000> : vector<1xf32>
        %101 = vector.multi_reduction <maximumf>, %100, %cst_68 [1] : vector<1x64xf32> to vector<1xf32>
        %102 = vector.shape_cast %101 : vector<1xf32> to vector<1x1xf32>
        %103 = vector.broadcast %102 : vector<1x1xf32> to vector<1x64xf32>
        %104 = arith.subf %100, %103 : vector<1x64xf32>
        %105 = math.exp %104 : vector<1x64xf32>
        %cst_69 = arith.constant dense<0.000000e+00> : vector<1xf32>
        %106 = vector.multi_reduction <add>, %105, %cst_69 [1] : vector<1x64xf32> to vector<1xf32>
        %107 = vector.shape_cast %106 : vector<1xf32> to vector<1x1xf32>
        %108 = vector.broadcast %107 : vector<1x1xf32> to vector<1x64xf32>
        %109 = arith.divf %105, %108 : vector<1x64xf32>
        %c0_70 = arith.constant 0 : index
        %c0_71 = arith.constant 0 : index
        %110 = vector.load %arg13[%c0_70, %c0_71] : memref<128x64xf32, #tpu.memory_space<vmem>>, vector<128x64xf32>
        %cst_72 = arith.constant dense<0.000000e+00> : vector<1x128xf32>
        %111 = tpu.matmul %109, %110, %cst_72 {dimension_numbers = #tpu.dot_dimension_numbers<[1], [1], [0], [0], [0, 0, 1, 0], [], []>} : vector<1x64xf32>, vector<128x64xf32>, vector<1x128xf32> -> vector<1x128xf32>
        %112 = arith.mulf %111, %86 : vector<1x128xf32>
        %c0_73 = arith.constant 0 : index
        %c0_74 = arith.constant 0 : index
        %113 = vector.load %arg21[%c0_73, %c0_74] : memref<1x128xf32, #tpu.memory_space<vmem>>, vector<1x128xf32>
        tpu.vector_store %arg21[%c0_73, %c0_74], %112 {strides = array<i32>} : memref<1x128xf32, #tpu.memory_space<vmem>>, vector<1x128xf32>,
        %c0_75 = arith.constant 0 : index
        %c0_76 = arith.constant 0 : index
        %114 = vector.load %arg14[%c0_75, %c0_76] : memref<1x64xf32, #tpu.memory_space<vmem>>, vector<1x64xf32>
        %115 = arith.mulf %109, %114 : vector<1x64xf32>
        %cst_77 = arith.constant dense<0.000000e+00> : vector<1xf32>
        %116 = vector.multi_reduction <add>, %115, %cst_77 [1] : vector<1x64xf32> to vector<1xf32>
        %117 = vector.shape_cast %116 : vector<1xf32> to vector<1x1xf32>
        %c0_78 = arith.constant 0 : index
        %c0_79 = arith.constant 0 : index
        %118 = vector.load %arg22[%c0_78, %c0_79] : memref<1x1xf32, #tpu.memory_space<vmem>>, vector<1x1xf32>
        tpu.vector_store %arg22[%c0_78, %c0_79], %117 {strides = array<i32>} : memref<1x1xf32, #tpu.memory_space<vmem>>, vector<1x1xf32>,
      } else {
      }
    } else {
    }
    %c1_i32 = arith.constant 1 : i32
    %3 = arith.cmpi eq, %arg1, %c1_i32 : i32
    %4 = arith.extui %3 : i1 to i32
    %c0_i32_1 = arith.constant 0 : i32
    %5 = arith.cmpi ne, %4, %c0_i32_1 : i32
    scf.if %5 {
      %6 = arith.index_cast %arg2 : i32 to index
      %c0 = arith.constant 0 : index
      %c0_2 = arith.constant 0 : index
      %7 = vector.load %arg23[%6, %c0, %c0_2] : memref<2x128x128xf32, #tpu.memory_space<vmem>>, vector<1x128x128xf32>
      %8 = vector.shape_cast %7 : vector<1x128x128xf32> to vector<128x128xf32>
      %c0_3 = arith.constant 0 : index
      %c0_4 = arith.constant 0 : index
      %9 = vector.load %arg20[%c0_3, %c0_4] : memref<128x1xf32, #tpu.memory_space<vmem>>, vector<128x1xf32>
      %10 = vector.broadcast %9 : vector<128x1xf32> to vector<128x128xf32>
      %11 = arith.mulf %10, %8 : vector<128x128xf32>
      %c0_5 = arith.constant 0 : index
      %c0_6 = arith.constant 0 : index
      %12 = vector.load %arg21[%c0_5, %c0_6] : memref<1x128xf32, #tpu.memory_space<vmem>>, vector<1x128xf32>
      %cst = arith.constant dense<0.000000e+00> : vector<1x128xf32>
      %13 = tpu.matmul %12, %8, %cst {dimension_numbers = #tpu.dot_dimension_numbers<[1], [0], [0], [1], [0, 0, 1, 1], [], []>} : vector<1x128xf32>, vector<128x128xf32>, vector<1x128xf32> -> vector<1x128xf32>
      %c0_7 = arith.constant 0 : index
      %c0_8 = arith.constant 0 : index
      %14 = vector.load %arg22[%c0_7, %c0_8] : memref<1x1xf32, #tpu.memory_space<vmem>>, vector<1x1xf32>
      %15 = vector.broadcast %14 : vector<1x1xf32> to vector<1x128xf32>
      %16 = arith.addf %13, %15 : vector<1x128xf32>
      %17 = arith.negf %16 : vector<1x128xf32>
      %18 = math.exp %17 : vector<1x128xf32>
      %cst_9 = arith.constant 1.000000e+00 : f32
      %19 = vector.broadcast %cst_9 : f32 to vector<1x128xf32>
      %20 = arith.addf %19, %18 : vector<1x128xf32>
      %21 = arith.divf %19, %20 : vector<1x128xf32>
      %22 = vector.broadcast %21 : vector<1x128xf32> to vector<128x128xf32>
      %23 = arith.mulf %22, %11 : vector<128x128xf32>
      %c0_10 = arith.constant 0 : index
      %c0_11 = arith.constant 0 : index
      %c0_12 = arith.constant 0 : index
      %24 = vector.load %arg15[%c0_10, %c0_11, %c0_12] : memref<1x128x128xf32, #tpu.memory_space<vmem>>, vector<1x128x128xf32>
      %25 = vector.shape_cast %24 : vector<1x128x128xf32> to vector<128x128xf32>
      %26 = vector.shape_cast %23 : vector<128x128xf32> to vector<1x128x128xf32>
      tpu.vector_store %arg15[%c0_10, %c0_11, %c0_12], %26 {strides = array<i32>} : memref<1x128x128xf32, #tpu.memory_space<vmem>>, vector<1x128x128xf32>,
    } else {
    }
    return
  }
  func.func @transform_0(%arg0: i32, %arg1: i32, %arg2: i32) -> (i32, i32, i32) {
    %c1_i32 = arith.constant 1 : i32
    %0 = arith.subi %c1_i32, %arg1 : i32
    %1 = arith.muli %arg2, %0 : i32
    %c1_i32_0 = arith.constant 1 : i32
    %2 = arith.muli %c1_i32_0, %arg1 : i32
    %3 = arith.addi %1, %2 : i32
    %c0_i32 = arith.constant 0 : i32
    %c0_i32_1 = arith.constant 0 : i32
    return %arg0, %c0_i32, %3 : i32, i32, i32
  }
  func.func @transform_1(%arg0: i32, %arg1: i32, %arg2: i32) -> (i32, i32) {
    %c0_i32 = arith.constant 0 : i32
    %c0_i32_0 = arith.constant 0 : i32
    %c0_i32_1 = arith.constant 0 : i32
    return %c0_i32, %c0_i32_0 : i32, i32
  }
  func.func @transform_2(%arg0: i32, %arg1: i32, %arg2: i32) -> (i32, i32) {
    %c0_i32 = arith.constant 0 : i32
    %c0_i32_0 = arith.constant 0 : i32
    %c0_i32_1 = arith.constant 0 : i32
    return %c0_i32, %c0_i32_0 : i32, i32
  }
  func.func @transform_3(%arg0: i32, %arg1: i32, %arg2: i32) -> (i32, i32) {
    %c0_i32 = arith.constant 0 : i32
    %c0_i32_0 = arith.constant 0 : i32
    %c0_i32_1 = arith.constant 0 : i32
    return %c0_i32, %c0_i32_0 : i32, i32
  }
  func.func @transform_4(%arg0: i32, %arg1: i32, %arg2: i32) -> (i32, i32) {
    %c0_i32 = arith.constant 0 : i32
    %c0_i32_0 = arith.constant 0 : i32
    %c0_i32_1 = arith.constant 0 : i32
    return %c0_i32, %c0_i32_0 : i32, i32
  }
  func.func @transform_5(%arg0: i32, %arg1: i32, %arg2: i32) -> (i32, i32) {
    %c0_i32 = arith.constant 0 : i32
    %c0_i32_0 = arith.constant 0 : i32
    %c0_i32_1 = arith.constant 0 : i32
    return %c0_i32, %c0_i32_0 : i32, i32
  }
  func.func @transform_6(%arg0: i32, %arg1: i32, %arg2: i32) -> (i32, i32) {
    %c0_i32 = arith.constant 0 : i32
    %c0_i32_0 = arith.constant 0 : i32
    %c0_i32_1 = arith.constant 0 : i32
    return %c0_i32, %c0_i32_0 : i32, i32
  }
  func.func @transform_7(%arg0: i32, %arg1: i32, %arg2: i32) -> (i32, i32) {
    %c0_i32 = arith.constant 0 : i32
    %c0_i32_0 = arith.constant 0 : i32
    %c0_i32_1 = arith.constant 0 : i32
    return %c0_i32, %c0_i32_0 : i32, i32
  }
  func.func @transform_8(%arg0: i32, %arg1: i32, %arg2: i32) -> (i32, i32) {
    %c0_i32 = arith.constant 0 : i32
    %c0_i32_0 = arith.constant 0 : i32
    %c0_i32_1 = arith.constant 0 : i32
    return %c0_i32, %c0_i32_0 : i32, i32
  }
  func.func @transform_9(%arg0: i32, %arg1: i32, %arg2: i32) -> (i32, i32) {
    %c0_i32 = arith.constant 0 : i32
    %c0_i32_0 = arith.constant 0 : i32
    %c0_i32_1 = arith.constant 0 : i32
    return %c0_i32, %c0_i32_0 : i32, i32
  }
  func.func @transform_10(%arg0: i32, %arg1: i32, %arg2: i32) -> (i32, i32) {
    %c0_i32 = arith.constant 0 : i32
    %c0_i32_0 = arith.constant 0 : i32
    %c0_i32_1 = arith.constant 0 : i32
    return %c0_i32, %c0_i32_0 : i32, i32
  }
  func.func @transform_11(%arg0: i32, %arg1: i32, %arg2: i32) -> (i32, i32) {
    %c0_i32 = arith.constant 0 : i32
    %c0_i32_0 = arith.constant 0 : i32
    %c0_i32_1 = arith.constant 0 : i32
    return %c0_i32, %c0_i32_0 : i32, i32
  }
  func.func @transform_12(%arg0: i32, %arg1: i32, %arg2: i32) -> (i32, i32, i32) {
    %0 = arith.muli %arg1, %arg2 : i32
    %c0_i32 = arith.constant 0 : i32
    %c0_i32_0 = arith.constant 0 : i32
    return %arg0, %c0_i32, %0 : i32, i32, i32
  }
}

</mosaic_0001>

<llo_original>
// kernel: tpu_custom_call.1
$region0: #{tpu_custom_call.1}
  #allocation0 [shape = 'u32[]', space=smem, size = 0x4, offset = 0x4, fixed_abs, tag = 'smem constant byte address 0x4 - core index']
  #allocation1 [shape = 'u32[144,128]{1,0:T(1,128)}', space=vmem, size = 0x12000, scoped, tag = 'internal scratch']
  #allocation2 [shape = 'f32[1,1]{1,0:T(1,128)}', space=vmem, size = 0x200, scoped, tag = 'scratch operand']
  #allocation3 [shape = 'f32[1,1]{1,0:T(1,128)}', space=vmem, size = 0x200, scoped, tag = 'scratch operand']
  #allocation4 [shape = 'f32[1,128]{1,0:T(1,128)}', space=vmem, size = 0x200, scoped, tag = 'scratch operand']
  #allocation5 [shape = 'f32[1,128]{1,0:T(1,128)}', space=vmem, size = 0x200, scoped, tag = 'scratch operand']
  #allocation6 [shape = 'f32[128,1]{1,0:T(8,128)}', space=vmem, size = 0x10000, scoped, tag = 'scratch operand']
  #allocation7 [shape = 'f32[1,128]{1,0:T(1,128)}', space=vmem, size = 0x200, scoped, tag = 'scratch operand']
  #allocation8 [shape = 'f32[1,1]{1,0:T(1,128)}', space=vmem, size = 0x200, scoped, tag = 'scratch operand']
  #allocation9 [shape = 'f32[2,128,128]{2,1,0:T(8,128)}', space=vmem, size = 0x20000, scoped, tag = 'scratch operand']
  %s0 = inlined_call_operand.vmem [shape: f32[2,128,256], index: 0, kind: input, shape index: {}]
  %s1 = inlined_call_operand.vmem [shape: f32[1,128], index: 1, kind: input, shape index: {}]
  %s2 = inlined_call_operand.vmem [shape: f32[128,64], index: 2, kind: input, shape index: {}]
  %s3 = inlined_call_operand.vmem [shape: f32[1,64], index: 3, kind: input, shape index: {}]
  %s4 = inlined_call_operand.hbm [shape: f32[64,128], index: 4, kind: input, shape index: {}]
  %s5 = inlined_call_operand.vmem [shape: f32[1,128], index: 5, kind: input, shape index: {}]
  %s6 = inlined_call_operand.vmem [shape: f32[1,128], index: 6, kind: input, shape index: {}]
  %s7 = inlined_call_operand.vmem [shape: f32[1,128], index: 7, kind: input, shape index: {}]
  %s8 = inlined_call_operand.vmem [shape: f32[128,64], index: 8, kind: input, shape index: {}]
  %s9 = inlined_call_operand.vmem [shape: f32[1,64], index: 9, kind: input, shape index: {}]
  %s10 = inlined_call_operand.vmem [shape: f32[128,64], index: 10, kind: input, shape index: {}]
  %s11 = inlined_call_operand.vmem [shape: f32[1,64], index: 11, kind: input, shape index: {}]
  %s12 = inlined_call_operand.hbm [shape: f32[2,128,256], index: 12, kind: output, shape index: {}]
  %s13 = sld [smem:[#allocation0]]
  $region139: #{tpu_custom_call.1} parent=0
    _
  %s15 = ssub.s32 1, %s13
  %s16 = scalar_select 0, %s15, %s13
  $region1: #{tpu_custom_call.1} parent=0
    #allocation10 [shape = 'u8[131072]{0}', space=vmem, size = 0x20000, scoped, tag = 'input window, operand 0']
    #allocation11 [shape = 'u8[32768]{0}', space=vmem, size = 0x8000, scoped, tag = 'input window, operand 4, single buffered']
    #allocation12 [shape = 's32[2]{0}', space=sflag, size = 0x8, scoped, tag = 'scoped memory for tpu_custom_call.1']
    #allocation13 [shape = 's32[2]{0}', space=sflag, size = 0x8, scoped, tag = 'scoped memory for tpu_custom_call.1']
    #allocation14 [shape = 'u8[131072]{0}', space=vmem, size = 0x20000, scoped, tag = 'output window, operand 0']
    %17 = vsyncpa [#allocation12], 0
    %18 = vsyncpa [#allocation13], 0
    %s19 = scalar_lea.sflag [#allocation13], 1
    %20 = vsyncpa %s19, 0
    loop: start=0, step=1, limit=10
    $region2: #{tpu_custom_call.1} parent=1 // loop_pre_header
      _
    $region3: #{tpu_custom_call.1} parent=1 // loop_header
      %s22 = sphi 0, %s26
      %p23 = scmp.ge.s32.totalorder %s22, 10
      %s29 = sphi 0, %s48
      %s30 = sphi 0, %s44
      %s31 = sphi 0, %s40
      %s32 = sphi 0, %s29
      %s33 = sphi 0, %s30
      %s34 = sphi 0, %s31
      %s35 = sphi 0, %s32
      %s36 = sphi 0, %s33
      %s37 = sphi 0, %s34
      %s59 = sphi 0, %s61
      %s62 = sphi 0, %s59
      %s63 = sphi 0, %s62
      %s79 = sphi 0, %s63
      %s83 = sphi 0, %s83
      %s85 = sphi 0, %s83
      %s86 = sphi 0, %s85
      %s100 = sphi 0, %s86
      %s104 = sphi 0, %s104
      %s106 = sphi 0, %s104
      %s107 = sphi 0, %s106
      %s121 = sphi 0, %s107
      %s125 = sphi 0, %s125
      %s127 = sphi 0, %s125
      %s128 = sphi 0, %s127
      %s142 = sphi 0, %s128
      %s146 = sphi 0, %s146
      %s148 = sphi 0, %s146
      %s149 = sphi 0, %s148
      %s163 = sphi 0, %s149
      %s167 = sphi 0, %s167
      %s169 = sphi 0, %s167
      %s170 = sphi 0, %s169
      %s184 = sphi 0, %s170
      %s188 = sphi 0, %s188
      %s190 = sphi 0, %s188
      %s191 = sphi 0, %s190
      %s205 = sphi 0, %s191
      %s209 = sphi 0, %s209
      %s211 = sphi 0, %s209
      %s212 = sphi 0, %s211
      %s226 = sphi 0, %s212
      %s230 = sphi 0, %s230
      %s232 = sphi 0, %s230
      %s233 = sphi 0, %s232
      %s247 = sphi 0, %s233
      %s251 = sphi 0, %s251
      %s253 = sphi 0, %s251
      %s254 = sphi 0, %s253
      %s268 = sphi 0, %s254
      %s272 = sphi 0, %s272
      %s274 = sphi 0, %s272
      %s275 = sphi 0, %s274
      %s289 = sphi 0, %s275
      %s293 = sphi 0, %s293
      %s295 = sphi 0, %s293
      %s296 = sphi 0, %s295
      %s310 = sphi 0, %s296
      %s320 = sphi 0, %s322
      %s323 = sphi 0, %s320
      %s324 = sphi 0, %s323
      %s340 = sphi 0, %s324
    $region4: #{tpu_custom_call.1} parent=1 // loop_header_branch
      %25 = sbr.rel (%p23) target = $region8
    $region5: #{tpu_custom_call.1} parent=1 // loop_body
      %s27 = ssub.s32 %s22, 1
      %s28 = ssub.s32 %s22, 2
      %s38 = sadd.s32 1, %s31
      %p39 = scmp.ge.s32.totalorder %s38, 2
      %s40 = scalar_select %p39, 0, %s38
      %s41 = sadd.s32 1, %s30
      %s42 = scalar_select %p39, %s41, %s30
      %p43 = scmp.ge.s32.totalorder %s42, 2
      %s44 = scalar_select %p43, 0, %s42
      %s45 = sadd.s32 1, %s29
      %s46 = scalar_select %p43, %s45, %s29
      %p47 = scmp.ge.s32.totalorder %s46, 2
      %s48 = scalar_select %p47, 0, %s46
      %s49 = ssub.s32 1, %s30
      %s50 = smul.u32 %s31, %s49
      %s51 = sadd.s32 %s50, %s30
      %s52 = ssub.s32 1, %s44
      %s53 = smul.u32 %s40, %s52
      %s54 = sadd.s32 %s53, %s44
      %s55 = ssub.s32 %s29, %s48
      %s56 = ssub.s32 %s51, %s54
      %s57 = sor.u32 %s55, %s56
      %p58 = scmp.eq.s32.totalorder %s57, 0
      %s60 = sadd.s32 %s59, 1
      %s61 = scalar_select %p58, %s59, %s60
      %p64 = pneg %p58
      %p65 = scmp.eq.s32.totalorder %s22, 7
      %p66 = por %p64, %p65
      %p67 = scmp.ne.s32.totalorder %s59, %s62
      %p68 = scmp.eq.s32.totalorder %s22, 0
      %p69 = por %p67, %p68
      %p70 = scmp.ne.s32.totalorder %s59, %s62
      %p71 = scmp.eq.s32.totalorder %s27, 7
      %p72 = por %p70, %p71
      %p73 = scmp.ne.s32.totalorder %s62, %s63
      %p74 = scmp.eq.s32.totalorder %s27, 0
      %p75 = por %p73, %p74
      %p76 = scmp.ne.s32.totalorder %s62, %s63
      %p77 = scmp.eq.s32.totalorder %s28, 7
      %p78 = por %p76, %p77
      %p80 = scmp.ne.s32.totalorder %s63, %s79
      %p81 = scmp.eq.s32.totalorder %s28, 0
      %p82 = por %p80, %p81
      %s84 = sadd.s32 %s83, 1
      %p87 = scmp.eq.s32.totalorder %s22, 7
      %p88 = scmp.ne.s32.totalorder %s83, %s85
      %p89 = scmp.eq.s32.totalorder %s22, 0
      %p90 = por %p88, %p89
      %p91 = scmp.ne.s32.totalorder %s83, %s85
      %p92 = scmp.eq.s32.totalorder %s27, 7
      %p93 = por %p91, %p92
      %p94 = scmp.ne.s32.totalorder %s85, %s86
      %p95 = scmp.eq.s32.totalorder %s27, 0
      %p96 = por %p94, %p95
      %p97 = scmp.ne.s32.totalorder %s85, %s86
      %p98 = scmp.eq.s32.totalorder %s28, 7
      %p99 = por %p97, %p98
      %p101 = scmp.ne.s32.totalorder %s86, %s100
      %p102 = scmp.eq.s32.totalorder %s28, 0
      %p103 = por %p101, %p102
      %s105 = sadd.s32 %s104, 1
      %p108 = scmp.eq.s32.totalorder %s22, 7
      %p109 = scmp.ne.s32.totalorder %s104, %s106
      %p110 = scmp.eq.s32.totalorder %s22, 0
      %p111 = por %p109, %p110
      %p112 = scmp.ne.s32.totalorder %s104, %s106
      %p113 = scmp.eq.s32.totalorder %s27, 7
      %p114 = por %p112, %p113
      %p115 = scmp.ne.s32.totalorder %s106, %s107
      %p116 = scmp.eq.s32.totalorder %s27, 0
      %p117 = por %p115, %p116
      %p118 = scmp.ne.s32.totalorder %s106, %s107
      %p119 = scmp.eq.s32.totalorder %s28, 7
      %p120 = por %p118, %p119
      %p122 = scmp.ne.s32.totalorder %s107, %s121
      %p123 = scmp.eq.s32.totalorder %s28, 0
      %p124 = por %p122, %p123
      %s126 = sadd.s32 %s125, 1
      %p129 = scmp.eq.s32.totalorder %s22, 7
      %p130 = scmp.ne.s32.totalorder %s125, %s127
      %p131 = scmp.eq.s32.totalorder %s22, 0
      %p132 = por %p130, %p131
      %p133 = scmp.ne.s32.totalorder %s125, %s127
      %p134 = scmp.eq.s32.totalorder %s27, 7
      %p135 = por %p133, %p134
      %p136 = scmp.ne.s32.totalorder %s127, %s128
      %p137 = scmp.eq.s32.totalorder %s27, 0
      %p138 = por %p136, %p137
      %p139 = scmp.ne.s32.totalorder %s127, %s128
      %p140 = scmp.eq.s32.totalorder %s28, 7
      %p141 = por %p139, %p140
      %p143 = scmp.ne.s32.totalorder %s128, %s142
      %p144 = scmp.eq.s32.totalorder %s28, 0
      %p145 = por %p143, %p144
      %s147 = sadd.s32 %s146, 1
      %p150 = scmp.eq.s32.totalorder %s22, 7
      %p151 = scmp.ne.s32.totalorder %s146, %s148
      %p152 = scmp.eq.s32.totalorder %s22, 0
      %p153 = por %p151, %p152
      %p154 = scmp.ne.s32.totalorder %s146, %s148
      %p155 = scmp.eq.s32.totalorder %s27, 7
      %p156 = por %p154, %p155
      %p157 = scmp.ne.s32.totalorder %s148, %s149
      %p158 = scmp.eq.s32.totalorder %s27, 0
      %p159 = por %p157, %p158
      %p160 = scmp.ne.s32.totalorder %s148, %s149
      %p161 = scmp.eq.s32.totalorder %s28, 7
      %p162 = por %p160, %p161
      %p164 = scmp.ne.s32.totalorder %s149, %s163
      %p165 = scmp.eq.s32.totalorder %s28, 0
      %p166 = por %p164, %p165
      %s168 = sadd.s32 %s167, 1
      %p171 = scmp.eq.s32.totalorder %s22, 7
      %p172 = scmp.ne.s32.totalorder %s167, %s169
      %p173 = scmp.eq.s32.totalorder %s22, 0
      %p174 = por %p172, %p173
      %p175 = scmp.ne.s32.totalorder %s167, %s169
      %p176 = scmp.eq.s32.totalorder %s27, 7
      %p177 = por %p175, %p176
      %p178 = scmp.ne.s32.totalorder %s169, %s170
      %p179 = scmp.eq.s32.totalorder %s27, 0
      %p180 = por %p178, %p179
      %p181 = scmp.ne.s32.totalorder %s169, %s170
      %p182 = scmp.eq.s32.totalorder %s28, 7
      %p183 = por %p181, %p182
      %p185 = scmp.ne.s32.totalorder %s170, %s184
      %p186 = scmp.eq.s32.totalorder %s28, 0
      %p187 = por %p185, %p186
      %s189 = sadd.s32 %s188, 1
      %p192 = scmp.eq.s32.totalorder %s22, 7
      %p193 = scmp.ne.s32.totalorder %s188, %s190
      %p194 = scmp.eq.s32.totalorder %s22, 0
      %p195 = por %p193, %p194
      %p196 = scmp.ne.s32.totalorder %s188, %s190
      %p197 = scmp.eq.s32.totalorder %s27, 7
      %p198 = por %p196, %p197
      %p199 = scmp.ne.s32.totalorder %s190, %s191
      %p200 = scmp.eq.s32.totalorder %s27, 0
      %p201 = por %p199, %p200
      %p202 = scmp.ne.s32.totalorder %s190, %s191
      %p203 = scmp.eq.s32.totalorder %s28, 7
      %p204 = por %p202, %p203
      %p206 = scmp.ne.s32.totalorder %s191, %s205
      %p207 = scmp.eq.s32.totalorder %s28, 0
      %p208 = por %p206, %p207
      %s210 = sadd.s32 %s209, 1
      %p213 = scmp.eq.s32.totalorder %s22, 7
      %p214 = scmp.ne.s32.totalorder %s209, %s211
      %p215 = scmp.eq.s32.totalorder %s22, 0
      %p216 = por %p214, %p215
      %p217 = scmp.ne.s32.totalorder %s209, %s211
      %p218 = scmp.eq.s32.totalorder %s27, 7
      %p219 = por %p217, %p218
      %p220 = scmp.ne.s32.totalorder %s211, %s212
      %p221 = scmp.eq.s32.totalorder %s27, 0
      %p222 = por %p220, %p221
      %p223 = scmp.ne.s32.totalorder %s211, %s212
      %p224 = scmp.eq.s32.totalorder %s28, 7
      %p225 = por %p223, %p224
      %p227 = scmp.ne.s32.totalorder %s212, %s226
      %p228 = scmp.eq.s32.totalorder %s28, 0
      %p229 = por %p227, %p228
      %s231 = sadd.s32 %s230, 1
      %p234 = scmp.eq.s32.totalorder %s22, 7
      %p235 = scmp.ne.s32.totalorder %s230, %s232
      %p236 = scmp.eq.s32.totalorder %s22, 0
      %p237 = por %p235, %p236
      %p238 = scmp.ne.s32.totalorder %s230, %s232
      %p239 = scmp.eq.s32.totalorder %s27, 7
      %p240 = por %p238, %p239
      %p241 = scmp.ne.s32.totalorder %s232, %s233
      %p242 = scmp.eq.s32.totalorder %s27, 0
      %p243 = por %p241, %p242
      %p244 = scmp.ne.s32.totalorder %s232, %s233
      %p245 = scmp.eq.s32.totalorder %s28, 7
      %p246 = por %p244, %p245
      %p248 = scmp.ne.s32.totalorder %s233, %s247
      %p249 = scmp.eq.s32.totalorder %s28, 0
      %p250 = por %p248, %p249
      %s252 = sadd.s32 %s251, 1
      %p255 = scmp.eq.s32.totalorder %s22, 7
      %p256 = scmp.ne.s32.totalorder %s251, %s253
      %p257 = scmp.eq.s32.totalorder %s22, 0
      %p258 = por %p256, %p257
      %p259 = scmp.ne.s32.totalorder %s251, %s253
      %p260 = scmp.eq.s32.totalorder %s27, 7
      %p261 = por %p259, %p260
      %p262 = scmp.ne.s32.totalorder %s253, %s254
      %p263 = scmp.eq.s32.totalorder %s27, 0
      %p264 = por %p262, %p263
      %p265 = scmp.ne.s32.totalorder %s253, %s254
      %p266 = scmp.eq.s32.totalorder %s28, 7
      %p267 = por %p265, %p266
      %p269 = scmp.ne.s32.totalorder %s254, %s268
      %p270 = scmp.eq.s32.totalorder %s28, 0
      %p271 = por %p269, %p270
      %s273 = sadd.s32 %s272, 1
      %p276 = scmp.eq.s32.totalorder %s22, 7
      %p277 = scmp.ne.s32.totalorder %s272, %s274
      %p278 = scmp.eq.s32.totalorder %s22, 0
      %p279 = por %p277, %p278
      %p280 = scmp.ne.s32.totalorder %s272, %s274
      %p281 = scmp.eq.s32.totalorder %s27, 7
      %p282 = por %p280, %p281
      %p283 = scmp.ne.s32.totalorder %s274, %s275
      %p284 = scmp.eq.s32.totalorder %s27, 0
      %p285 = por %p283, %p284
      %p286 = scmp.ne.s32.totalorder %s274, %s275
      %p287 = scmp.eq.s32.totalorder %s28, 7
      %p288 = por %p286, %p287
      %p290 = scmp.ne.s32.totalorder %s275, %s289
      %p291 = scmp.eq.s32.totalorder %s28, 0
      %p292 = por %p290, %p291
      %s294 = sadd.s32 %s293, 1
      %p297 = scmp.eq.s32.totalorder %s22, 7
      %p298 = scmp.ne.s32.totalorder %s293, %s295
      %p299 = scmp.eq.s32.totalorder %s22, 0
      %p300 = por %p298, %p299
      %p301 = scmp.ne.s32.totalorder %s293, %s295
      %p302 = scmp.eq.s32.totalorder %s27, 7
      %p303 = por %p301, %p302
      %p304 = scmp.ne.s32.totalorder %s295, %s296
      %p305 = scmp.eq.s32.totalorder %s27, 0
      %p306 = por %p304, %p305
      %p307 = scmp.ne.s32.totalorder %s295, %s296
      %p308 = scmp.eq.s32.totalorder %s28, 7
      %p309 = por %p307, %p308
      %p311 = scmp.ne.s32.totalorder %s296, %s310
      %p312 = scmp.eq.s32.totalorder %s28, 0
      %p313 = por %p311, %p312
      %s314 = smul.u32 %s30, %s31
      %s315 = smul.u32 %s44, %s40
      %s316 = ssub.s32 %s29, %s48
      %s317 = ssub.s32 %s314, %s315
      %s318 = sor.u32 %s316, %s317
      %p319 = scmp.eq.s32.totalorder %s318, 0
      %s321 = sadd.s32 %s320, 1
      %s322 = scalar_select %p319, %s320, %s321
      %p325 = pneg %p319
      %p326 = scmp.eq.s32.totalorder %s22, 7
      %p327 = por %p325, %p326
      %p328 = scmp.ne.s32.totalorder %s320, %s323
      %p329 = scmp.eq.s32.totalorder %s22, 0
      %p330 = por %p328, %p329
      %p331 = scmp.ne.s32.totalorder %s320, %s323
      %p332 = scmp.eq.s32.totalorder %s27, 7
      %p333 = por %p331, %p332
      %p334 = scmp.ne.s32.totalorder %s323, %s324
      %p335 = scmp.eq.s32.totalorder %s27, 0
      %p336 = por %p334, %p335
      %p337 = scmp.ne.s32.totalorder %s323, %s324
      %p338 = scmp.eq.s32.totalorder %s28, 7
      %p339 = por %p337, %p338
      %p341 = scmp.ne.s32.totalorder %s324, %s340
      %p342 = scmp.eq.s32.totalorder %s28, 0
      %p343 = por %p341, %p342
      %p344 = scmp.le.s32.totalorder 1, %s22
      %p345 = scmp.lt.s32.totalorder %s22, 9
      %p346 = pnand %p344, %p345
      %p347 = pneg %p346
      // Predicated region
      $region9: #{tpu_custom_call.1} parent=5 // pred_check
        _
      $region10: #{tpu_custom_call.1} parent=5 // pred_check_branch
        %349 = sbr.rel (%p346) target = $region12
      $region11: #{tpu_custom_call.1} parent=5 // pred_region
        %s350 = ssub.s32 %s22, 1
        // Predicated region
        $region13: #{tpu_custom_call.1} parent=11 // pred_check
          %p351 = pneg %p96
        $region14: #{tpu_custom_call.1} parent=11 // pred_check_branch
          %353 = sbr.rel (%p351) target = $region16
        $region15: #{tpu_custom_call.1} parent=11 // pred_region
          _
        $region16: #{tpu_custom_call.1} parent=11 // pred_fallthru
          _
        // Predicated region
        $region17: #{tpu_custom_call.1} parent=11 // pred_check
          %p354 = pneg %p117
        $region18: #{tpu_custom_call.1} parent=11 // pred_check_branch
          %356 = sbr.rel (%p354) target = $region20
        $region19: #{tpu_custom_call.1} parent=11 // pred_region
          _
        $region20: #{tpu_custom_call.1} parent=11 // pred_fallthru
          _
        // Predicated region
        $region21: #{tpu_custom_call.1} parent=11 // pred_check
          %p357 = pneg %p138
        $region22: #{tpu_custom_call.1} parent=11 // pred_check_branch
          %359 = sbr.rel (%p357) target = $region24
        $region23: #{tpu_custom_call.1} parent=11 // pred_region
          _
        $region24: #{tpu_custom_call.1} parent=11 // pred_fallthru
          _
        // Predicated region
        $region25: #{tpu_custom_call.1} parent=11 // pred_check
          %p360 = pneg %p159
        $region26: #{tpu_custom_call.1} parent=11 // pred_check_branch
          %362 = sbr.rel (%p360) target = $region28
        $region27: #{tpu_custom_call.1} parent=11 // pred_region
          %s364 = ssub.s32 1024, 1024
          %365 = vsyncadd [#allocation12], %s364
          %s366 = sshll.u32 [#allocation11], 4
          %s367 = int_to_ptr.vmem [resolvable:$true] %s366
          %372 = dma.hbm_to_vmem [thread:$0]  %s4, 1024, %s367, [#allocation12], 128, 128, 8
        $region28: #{tpu_custom_call.1} parent=11 // pred_fallthru
          _
        // Predicated region
        $region29: #{tpu_custom_call.1} parent=11 // pred_check
          %p373 = pneg %p180
        $region30: #{tpu_custom_call.1} parent=11 // pred_check_branch
          %375 = sbr.rel (%p373) target = $region32
        $region31: #{tpu_custom_call.1} parent=11 // pred_region
          _
        $region32: #{tpu_custom_call.1} parent=11 // pred_fallthru
          _
        // Predicated region
        $region33: #{tpu_custom_call.1} parent=11 // pred_check
          %p376 = pneg %p201
        $region34: #{tpu_custom_call.1} parent=11 // pred_check_branch
          %378 = sbr.rel (%p376) target = $region36
        $region35: #{tpu_custom_call.1} parent=11 // pred_region
          _
        $region36: #{tpu_custom_call.1} parent=11 // pred_fallthru
          _
        // Predicated region
        $region37: #{tpu_custom_call.1} parent=11 // pred_check
          %p379 = pneg %p222
        $region38: #{tpu_custom_call.1} parent=11 // pred_check_branch
          %381 = sbr.rel (%p379) target = $region40
        $region39: #{tpu_custom_call.1} parent=11 // pred_region
          _
        $region40: #{tpu_custom_call.1} parent=11 // pred_fallthru
          _
        // Predicated region
        $region41: #{tpu_custom_call.1} parent=11 // pred_check
          %p382 = pneg %p243
        $region42: #{tpu_custom_call.1} parent=11 // pred_check_branch
          %384 = sbr.rel (%p382) target = $region44
        $region43: #{tpu_custom_call.1} parent=11 // pred_region
          _
        $region44: #{tpu_custom_call.1} parent=11 // pred_fallthru
          _
        // Predicated region
        $region45: #{tpu_custom_call.1} parent=11 // pred_check
          %p385 = pneg %p264
        $region46: #{tpu_custom_call.1} parent=11 // pred_check_branch
          %387 = sbr.rel (%p385) target = $region48
        $region47: #{tpu_custom_call.1} parent=11 // pred_region
          _
        $region48: #{tpu_custom_call.1} parent=11 // pred_fallthru
          _
        // Predicated region
        $region49: #{tpu_custom_call.1} parent=11 // pred_check
          %p388 = pneg %p285
        $region50: #{tpu_custom_call.1} parent=11 // pred_check_branch
          %390 = sbr.rel (%p388) target = $region52
        $region51: #{tpu_custom_call.1} parent=11 // pred_region
          _
        $region52: #{tpu_custom_call.1} parent=11 // pred_fallthru
          _
        // Predicated region
        $region53: #{tpu_custom_call.1} parent=11 // pred_check
          %p391 = pneg %p306
        $region54: #{tpu_custom_call.1} parent=11 // pred_check_branch
          %393 = sbr.rel (%p391) target = $region56
        $region55: #{tpu_custom_call.1} parent=11 // pred_region
          _
        $region56: #{tpu_custom_call.1} parent=11 // pred_fallthru
          _
      $region12: #{tpu_custom_call.1} parent=5 // pred_fallthru
        _
      %p394 = scmp.lt.s32.totalorder %s22, 8
      // Predicated region
      $region57: #{tpu_custom_call.1} parent=5 // pred_check
        %p395 = pneg %p394
      $region58: #{tpu_custom_call.1} parent=5 // pred_check_branch
        %397 = sbr.rel (%p395) target = $region60
      $region59: #{tpu_custom_call.1} parent=5 // pred_region
        // Predicated region
        $region61: #{tpu_custom_call.1} parent=59 // pred_check
          %p398 = pneg %p69
        $region62: #{tpu_custom_call.1} parent=59 // pred_check_branch
          %400 = sbr.rel (%p398) target = $region64
        $region63: #{tpu_custom_call.1} parent=59 // pred_region
          %s401 = sand.u32 %s59, 1
          %s402 = sand.u32 %s59, 1
          %s403 = smul.addr %s402, 128
          %s404 = scalar_lea.vmem [#allocation10], %s403
          %s405 = ssub.s32 1, %s30
          %s406 = smul.u32 %s31, %s405
          %s407 = sadd.s32 %s406, %s30
          %s408 = smul.addr %s29, 32
          %s409 = sadd.s32 %s407, %s408
          %s410 = smul.addr %s409, 8
          %s411 = scalar_lea.vmem %s0, %s410
          // Predicated region
          $region65: #{tpu_custom_call.1} parent=63 // pred_check
            _
          $region66: #{tpu_custom_call.1} parent=63 // pred_check_branch
            %413 = sbr.rel (0) target = $region68
          $region67: #{tpu_custom_call.1} parent=63 // pred_region
            // Predicated region
            $region69: #{tpu_custom_call.1} parent=67 // pred_check
              _
            $region70: #{tpu_custom_call.1} parent=67 // pred_check_branch
              %415 = sbr.rel (0) target = $region72
            $region71: #{tpu_custom_call.1} parent=67 // pred_region
              // Predicated region
              $region84: #{tpu_custom_call.1} parent=71 // pred_check
                _
              $region85: #{tpu_custom_call.1} parent=71 // pred_check_branch
                %461 = sbr.rel (0) target = $region87
              $region86: #{tpu_custom_call.1} parent=71 // pred_region
                loop: start=0, step=1, limit=1
                $region88: #{tpu_custom_call.1} parent=86 // loop_pre_header
                  _
                $region89: #{tpu_custom_call.1} parent=86 // loop_header
                  %s463 = sphi 0, %s467
                  %p464 = scmp.ge.s32.totalorder %s463, 1
                  %s468 = sphi %s411, %s411
                  %s469 = sphi %s404, %s404
                $region90: #{tpu_custom_call.1} parent=86 // loop_header_branch
                  %466 = sbr.rel (%p464) target = $region94
                $region91: #{tpu_custom_call.1} parent=86 // loop_body
                  %v470 = vld [vmem:[%s468] sm:$0xff]
                  %471 = vst [vmem:[%s469] sm:$0xff] %v470
                  %v472 = vld [vmem:[%s468 + $0x10] sm:$0xff]
                  %473 = vst [vmem:[%s469 + $0x8] sm:$0xff] %v472
                  %v474 = vld [vmem:[%s468 + $0x20] sm:$0xff]
                  %475 = vst [vmem:[%s469 + $0x10] sm:$0xff] %v474
                  %v476 = vld [vmem:[%s468 + $0x30] sm:$0xff]
                  %477 = vst [vmem:[%s469 + $0x18] sm:$0xff] %v476
                  %v478 = vld [vmem:[%s468 + $0x40] sm:$0xff]
                  %479 = vst [vmem:[%s469 + $0x20] sm:$0xff] %v478
                  %v480 = vld [vmem:[%s468 + $0x50] sm:$0xff]
                  %481 = vst [vmem:[%s469 + $0x28] sm:$0xff] %v480
                  %v482 = vld [vmem:[%s468 + $0x60] sm:$0xff]
                  %483 = vst [vmem:[%s469 + $0x30] sm:$0xff] %v482
                  %v484 = vld [vmem:[%s468 + $0x70] sm:$0xff]
                  %485 = vst [vmem:[%s469 + $0x38] sm:$0xff] %v484
                  %v486 = vld [vmem:[%s468 + $0x80] sm:$0xff]
                  %487 = vst [vmem:[%s469 + $0x40] sm:$0xff] %v486
                  %v488 = vld [vmem:[%s468 + $0x90] sm:$0xff]
                  %489 = vst [vmem:[%s469 + $0x48] sm:$0xff] %v488
                  %v490 = vld [vmem:[%s468 + $0xa0] sm:$0xff]
                  %491 = vst [vmem:[%s469 + $0x50] sm:$0xff] %v490
                  %v492 = vld [vmem:[%s468 + $0xb0] sm:$0xff]
                  %493 = vst [vmem:[%s469 + $0x58] sm:$0xff] %v492
                  %v494 = vld [vmem:[%s468 + $0xc0] sm:$0xff]
                  %495 = vst [vmem:[%s469 + $0x60] sm:$0xff] %v494
                  %v496 = vld [vmem:[%s468 + $0xd0] sm:$0xff]
                  %497 = vst [vmem:[%s469 + $0x68] sm:$0xff] %v496
                  %v498 = vld [vmem:[%s468 + $0xe0] sm:$0xff]
                  %499 = vst [vmem:[%s469 + $0x70] sm:$0xff] %v498
                  %v500 = vld [vmem:[%s468 + $0xf0] sm:$0xff]
                  %501 = vst [vmem:[%s469 + $0x78] sm:$0xff] %v500
                $region92: #{tpu_custom_call.1} parent=86 // loop_footer
                  %s467 = sadd.s32 1, %s463
                $region93: #{tpu_custom_call.1} parent=86 // loop_footer_branch
                  %462 = sbr.rel target = $region89
                $region94: #{tpu_custom_call.1} parent=86 // loop_exit
                  _
              $region87: #{tpu_custom_call.1} parent=71 // pred_fallthru
                _
              // Predicated region
              $region95: #{tpu_custom_call.1} parent=71 // pred_check
                _
              $region96: #{tpu_custom_call.1} parent=71 // pred_check_branch
                %503 = sbr.rel target = $region98
              $region97: #{tpu_custom_call.1} parent=71 // pred_region
                _
              $region98: #{tpu_custom_call.1} parent=71 // pred_fallthru
                _
            $region72: #{tpu_custom_call.1} parent=67 // pred_fallthru
              _
            // Predicated region
            $region73: #{tpu_custom_call.1} parent=67 // pred_check
              _
            $region74: #{tpu_custom_call.1} parent=67 // pred_check_branch
              %417 = sbr.rel target = $region76
            $region75: #{tpu_custom_call.1} parent=67 // pred_region
              %s419 = ssub.s32 256, 1
              loop: start=0, step=1, limit=1
              $region77: #{tpu_custom_call.1} parent=75 // loop_pre_header
                _
              $region78: #{tpu_custom_call.1} parent=75 // loop_header
                %s421 = sphi 0, %s425
                %p422 = scmp.ge.s32.totalorder %s421, 1
                %s426 = sphi %s411, %s411
                %s427 = sphi %s404, %s404
              $region79: #{tpu_custom_call.1} parent=75 // loop_header_branch
                %424 = sbr.rel (%p422) target = $region83
              $region80: #{tpu_custom_call.1} parent=75 // loop_body
                %v428 = vld [vmem:[%s426] sm:%s419]
                %429 = vst [vmem:[%s427] sm:%s419] %v428
                %v430 = vld [vmem:[%s426 + $0x10] sm:%s419]
                %431 = vst [vmem:[%s427 + $0x8] sm:%s419] %v430
                %v432 = vld [vmem:[%s426 + $0x20] sm:%s419]
                %433 = vst [vmem:[%s427 + $0x10] sm:%s419] %v432
                %v434 = vld [vmem:[%s426 + $0x30] sm:%s419]
                %435 = vst [vmem:[%s427 + $0x18] sm:%s419] %v434
                %v436 = vld [vmem:[%s426 + $0x40] sm:%s419]
                %437 = vst [vmem:[%s427 + $0x20] sm:%s419] %v436
                %v438 = vld [vmem:[%s426 + $0x50] sm:%s419]
                %439 = vst [vmem:[%s427 + $0x28] sm:%s419] %v438
                %v440 = vld [vmem:[%s426 + $0x60] sm:%s419]
                %441 = vst [vmem:[%s427 + $0x30] sm:%s419] %v440
                %v442 = vld [vmem:[%s426 + $0x70] sm:%s419]
                %443 = vst [vmem:[%s427 + $0x38] sm:%s419] %v442
                %v444 = vld [vmem:[%s426 + $0x80] sm:%s419]
                %445 = vst [vmem:[%s427 + $0x40] sm:%s419] %v444
                %v446 = vld [vmem:[%s426 + $0x90] sm:%s419]
                %447 = vst [vmem:[%s427 + $0x48] sm:%s419] %v446
                %v448 = vld [vmem:[%s426 + $0xa0] sm:%s419]
                %449 = vst [vmem:[%s427 + $0x50] sm:%s419] %v448
                %v450 = vld [vmem:[%s426 + $0xb0] sm:%s419]
                %451 = vst [vmem:[%s427 + $0x58] sm:%s419] %v450
                %v452 = vld [vmem:[%s426 + $0xc0] sm:%s419]
                %453 = vst [vmem:[%s427 + $0x60] sm:%s419] %v452
                %v454 = vld [vmem:[%s426 + $0xd0] sm:%s419]
                %455 = vst [vmem:[%s427 + $0x68] sm:%s419] %v454
                %v456 = vld [vmem:[%s426 + $0xe0] sm:%s419]
                %457 = vst [vmem:[%s427 + $0x70] sm:%s419] %v456
                %v458 = vld [vmem:[%s426 + $0xf0] sm:%s419]
                %459 = vst [vmem:[%s427 + $0x78] sm:%s419] %v458
              $region81: #{tpu_custom_call.1} parent=75 // loop_footer
                %s425 = sadd.s32 1, %s421
              $region82: #{tpu_custom_call.1} parent=75 // loop_footer_branch
                %420 = sbr.rel target = $region78
              $region83: #{tpu_custom_call.1} parent=75 // loop_exit
                _
            $region76: #{tpu_custom_call.1} parent=67 // pred_fallthru
              _
          $region68: #{tpu_custom_call.1} parent=63 // pred_fallthru
            _
          %504 = vnop
        $region64: #{tpu_custom_call.1} parent=59 // pred_fallthru
          _
      $region60: #{tpu_custom_call.1} parent=5 // pred_fallthru
        _
      %p505 = scmp.le.s32.totalorder 1, %s22
      %p506 = scmp.lt.s32.totalorder %s22, 9
      %p507 = pnand %p505, %p506
      %p508 = pneg %p507
      // Predicated region
      $region99: #{tpu_custom_call.1} parent=5 // pred_check
        _
      $region100: #{tpu_custom_call.1} parent=5 // pred_check_branch
        %510 = sbr.rel (%p507) target = $region102
      $region101: #{tpu_custom_call.1} parent=5 // pred_region
        %s511 = ssub.s32 %s22, 1
        %s512 = sand.u32 %s62, 1
        %s513 = sand.u32 %s62, 1
        %s514 = smul.addr %s513, 128
        %s515 = scalar_lea.vmem [#allocation10], %s514
        // Predicated region
        $region103: #{tpu_custom_call.1} parent=101 // pred_check
          %p516 = pneg %p75
        $region104: #{tpu_custom_call.1} parent=101 // pred_check_branch
          %518 = sbr.rel (%p516) target = $region106
        $region105: #{tpu_custom_call.1} parent=101 // pred_region
          _
        $region106: #{tpu_custom_call.1} parent=101 // pred_fallthru
          _
        // Predicated region
        $region107: #{tpu_custom_call.1} parent=101 // pred_check
          %p519 = pneg %p159
        $region108: #{tpu_custom_call.1} parent=101 // pred_check_branch
          %521 = sbr.rel (%p519) target = $region110
        $region109: #{tpu_custom_call.1} parent=101 // pred_region
          %522 = dma.done [#allocation12], 1024
        $region110: #{tpu_custom_call.1} parent=101 // pred_fallthru
          _
        %s523 = sand.u32 %s62, 1
        %s524 = sand.u32 %s62, 1
        %s525 = smul.addr %s524, 128
        %s526 = scalar_lea.vmem [#allocation10], %s525
        %p527 = pneg %p75
        %p528 = pneg %p72
        %p529 = pneg %p96
        %p530 = pneg %p93
        %p531 = pneg %p117
        %p532 = pneg %p114
        %p533 = pneg %p138
        %p534 = pneg %p135
        %p535 = pneg %p159
        %p536 = pneg %p156
        %p537 = pneg %p180
        %p538 = pneg %p177
        %p539 = pneg %p201
        %p540 = pneg %p198
        %p541 = pneg %p222
        %p542 = pneg %p219
        %p543 = pneg %p243
        %p544 = pneg %p240
        %p545 = pneg %p264
        %p546 = pneg %p261
        %p547 = pneg %p285
        %p548 = pneg %p282
        %p549 = pneg %p306
        %p550 = pneg %p303
        %p551 = pneg %p336
        %p552 = pneg %p333
        %s553 = sand.u32 %s323, 1
        %s554 = scalar_lea.sflag [#allocation13], %s553
        %s555 = sand.u32 %s323, 1
        %s556 = smul.addr %s555, 128
        %s557 = scalar_lea.vmem [#allocation14], %s556
        %s558 = ssub.s32 1, %s33
        %s559 = smul.u32 %s34, %s558
        %s560 = sadd.s32 %s559, %s33
        %s561 = smul.u32 %s33, %s34
        %p562 = scmp.eq.s32.totalorder %s33, 0
        // Predicated region
        $region111: #{tpu_custom_call.1} parent=101 // pred_check
          %p563 = pneg %p562
        $region112: #{tpu_custom_call.1} parent=101 // pred_check_branch
          %565 = sbr.rel (%p563) target = $region114
        $region113: #{tpu_custom_call.1} parent=101 // pred_region
          %v566 = vld [vmem:[%s515] sm:$0xff]
          %v567 = vld [vmem:[%s515 + $0x8] sm:$0xff]
          %v568 = vld [vmem:[%s515 + $0x10] sm:$0xff]
          %v569 = vld [vmem:[%s515 + $0x18] sm:$0xff]
          %v570 = vld [vmem:[%s515 + $0x20] sm:$0xff]
          %v571 = vld [vmem:[%s515 + $0x28] sm:$0xff]
          %v572 = vld [vmem:[%s515 + $0x30] sm:$0xff]
          %v573 = vld [vmem:[%s515 + $0x38] sm:$0xff]
          %v574 = vld [vmem:[%s515 + $0x40] sm:$0xff]
          %v575 = vld [vmem:[%s515 + $0x48] sm:$0xff]
          %v576 = vld [vmem:[%s515 + $0x50] sm:$0xff]
          %v577 = vld [vmem:[%s515 + $0x58] sm:$0xff]
          %v578 = vld [vmem:[%s515 + $0x60] sm:$0xff]
          %v579 = vld [vmem:[%s515 + $0x68] sm:$0xff]
          %v580 = vld [vmem:[%s515 + $0x70] sm:$0xff]
          %v581 = vld [vmem:[%s515 + $0x78] sm:$0xff]
          %s582 = smul.u32 %s34, 128
          %s583 = scalar_lea.vmem [#allocation9], %s582
          %584 = vst [vmem:[%s583] sm:$0xff] %v566
          %585 = vst [vmem:[%s583 + $0x8] sm:$0xff] %v567
          %586 = vst [vmem:[%s583 + $0x10] sm:$0xff] %v568
          %587 = vst [vmem:[%s583 + $0x18] sm:$0xff] %v569
          %588 = vst [vmem:[%s583 + $0x20] sm:$0xff] %v570
          %589 = vst [vmem:[%s583 + $0x28] sm:$0xff] %v571
          %590 = vst [vmem:[%s583 + $0x30] sm:$0xff] %v572
          %591 = vst [vmem:[%s583 + $0x38] sm:$0xff] %v573
          %592 = vst [vmem:[%s583 + $0x40] sm:$0xff] %v574
          %593 = vst [vmem:[%s583 + $0x48] sm:$0xff] %v575
          %594 = vst [vmem:[%s583 + $0x50] sm:$0xff] %v576
          %595 = vst [vmem:[%s583 + $0x58] sm:$0xff] %v577
          %596 = vst [vmem:[%s583 + $0x60] sm:$0xff] %v578
          %597 = vst [vmem:[%s583 + $0x68] sm:$0xff] %v579
          %598 = vst [vmem:[%s583 + $0x70] sm:$0xff] %v580
          %599 = vst [vmem:[%s583 + $0x78] sm:$0xff] %v581
          %p600 = scmp.eq.s32.totalorder %s34, 0
          // Predicated region
          $region115: #{tpu_custom_call.1} parent=113 // pred_check
            %p601 = pneg %p600
          $region116: #{tpu_custom_call.1} parent=113 // pred_check_branch
            %603 = sbr.rel (%p601) target = $region118
          $region117: #{tpu_custom_call.1} parent=113 // pred_region
            %vm604 = vcmask 0
            %605 = vst.msk [vmem:[#allocation2] sm:$0x1] %vm604, -1e+30
            %606 = vst.msk [vmem:[#allocation3] sm:$0x1] %vm604, 0.0
            %607 = vst [vmem:[#allocation4] sm:$0x1] 0.0
            %608 = vst [vmem:[#allocation5] sm:$0x1] 0.0
          $region118: #{tpu_custom_call.1} parent=113 // pred_fallthru
            _
          %v609 = vld [vmem:[%s1] sm:$0x1]
          %610 = vmatprep.subr.mxu0 0.0
          %611 = vmatpush1.msra.mxu0 %v581
          %612 = vmatprep.subr.mxu0 0.0
          %613 = vmatpush1.msra.mxu0 %v580
          %614 = vmatprep.subr.mxu0 0.0
          %615 = vmatpush1.msra.mxu0 %v579
          %616 = vmatprep.subr.mxu0 0.0
          %617 = vmatpush1.msra.mxu0 %v578
          %618 = vmatprep.subr.mxu0 0.0
          %619 = vmatpush1.msra.mxu0 %v577
          %620 = vmatprep.subr.mxu0 0.0
          %621 = vmatpush1.msra.mxu0 %v576
          %622 = vmatprep.subr.mxu0 0.0
          %623 = vmatpush1.msra.mxu0 %v575
          %624 = vmatprep.subr.mxu0 0.0
          %625 = vmatpush1.msra.mxu0 %v574
          %626 = vmatprep.subr.mxu0 0.0
          %627 = vmatpush1.msra.mxu0 %v573
          %628 = vmatprep.subr.mxu0 0.0
          %629 = vmatpush1.msra.mxu0 %v572
          %630 = vmatprep.subr.mxu0 0.0
          %631 = vmatpush1.msra.mxu0 %v571
          %632 = vmatprep.subr.mxu0 0.0
          %633 = vmatpush1.msra.mxu0 %v570
          %634 = vmatprep.subr.mxu0 0.0
          %635 = vmatpush1.msra.mxu0 %v569
          %636 = vmatprep.subr.mxu0 0.0
          %637 = vmatpush1.msra.mxu0 %v568
          %638 = vmatprep.subr.mxu0 0.0
          %639 = vmatpush1.msra.mxu0 %v567
          %640 = vmatprep.subr.mxu0 0.0
          %641 = vmatpush1.msra.mxu0 %v566
          %642 = vmatprep.subr.mxu0 0.0
          %643 = vmatpush2.msra.mxu0 0.0
          %644 = vmatprep.subr.mxu0 0.0
          %645 = vmatpush2.msra.mxu0 0.0
          %646 = vmatprep.subr.mxu0 0.0
          %647 = vmatpush2.msra.mxu0 0.0
          %648 = vmatprep.subr.mxu0 0.0
          %649 = vmatpush2.msra.mxu0 0.0
          %650 = vmatprep.subr.mxu0 0.0
          %651 = vmatpush2.msra.mxu0 0.0
          %652 = vmatprep.subr.mxu0 0.0
          %653 = vmatpush2.msra.mxu0 0.0
          %654 = vmatprep.subr.mxu0 0.0
          %655 = vmatpush2.msra.mxu0 0.0
          %656 = vmatprep.subr.mxu0 0.0
          %657 = vmatpush2.msra.mxu0 0.0
          %658 = vmatprep.subr.mxu0 0.0
          %659 = vmatpush2.msra.mxu0 0.0
          %660 = vmatprep.subr.mxu0 0.0
          %661 = vmatpush2.msra.mxu0 0.0
          %662 = vmatprep.subr.mxu0 0.0
          %663 = vmatpush2.msra.mxu0 0.0
          %664 = vmatprep.subr.mxu0 0.0
          %665 = vmatpush2.msra.mxu0 0.0
          %666 = vmatprep.subr.mxu0 0.0
          %667 = vmatpush2.msra.mxu0 0.0
          %668 = vmatprep.subr.mxu0 0.0
          %669 = vmatpush2.msra.mxu0 0.0
          %670 = vmatprep.subr.mxu0 0.0
          %671 = vmatpush2.msra.mxu0 0.0
          %672 = vmatprep.subr.mxu0 0.0
          %673 = vmatpush2.msra.mxu0 0.0
          %674 = vmatprep.mubr.f32.mxu0 0.0
          %675 = vmatmul.mubr.f32.gmra.mxu0 %v609
          %v676 = vpop.f32.mrf.mxu0
          %v677 = vadd.f32 0.0, %v676
          %v678 = vpop.f32.mrf.mxu0
          %679 = vdwg.mxu0
          %v680 = vld [vmem:[#allocation2] sm:$0x1]
          %vm681 = vcmask 1040384
          %v682 = vsel %vm681, %v677, -inf
          %683 = vmax.xlane.f32.xlu0 %v682
          %v684 = vpop.xlane.xlu0 %683
          %v685 = vmax.f32 %v680, %v684
          %v686 = vsub.f32 %v680, %v685
          %v687 = vmul.f32 %v686, 1.442695
          %v688 = vpow.pop %v687
          %690 = vset.pattern.permute.xlu0 0
          %691 = vperm.xlu0 %690, %v685
          %v692 = vpop.permute.xlu0 %691
          %v694 = vlaneseq
          %v695 = vshrl.u32 %v694, 7
          %v696 = vsub.s32 0, %v695
          %v697 = vrot.slane %v692, %v696
          %v698 = vsub.f32 %v677, %v697
          %v699 = vmul.f32 %v698, 1.442695
          %v700 = vpow.pop %v699
          %v701 = vld [vmem:[#allocation3] sm:$0x1]
          %v702 = vmul.f32 %v688, %v701
          %v703 = vsel %vm681, %v700, 0.0
          %704 = vadd.xlane.f32.xlu0 %v703
          %v705 = vpop.xlane.xlu0 %704
          %v706 = vadd.f32 %v702, %v705
          %vm707 = vcmask 0
          %708 = vst.msk [vmem:[#allocation3] sm:$0x1] %vm707, %v706
          %v709 = vld [vmem:[#allocation4] sm:$0x1]
          %711 = vset.pattern.permute.xlu0 0
          %712 = vperm.xlu0 %711, %v688
          %v713 = vpop.permute.xlu0 %712
          %v715 = vlaneseq
          %v716 = vshrl.u32 %v715, 7
          %v717 = vsub.s32 0, %v716
          %v718 = vrot.slane %v713, %v717
          %v719 = vmul.f32 %v718, %v709
          %720 = vmatprep.subr.mxu0 0.0
          %721 = vmatpush1.xpose.msra.mxu0 %v581
          %722 = vmatprep.subr.mxu0 0.0
          %723 = vmatpush1.xpose.msra.mxu0 %v580
          %724 = vmatprep.subr.mxu0 0.0
          %725 = vmatpush1.xpose.msra.mxu0 %v579
          %726 = vmatprep.subr.mxu0 0.0
          %727 = vmatpush1.xpose.msra.mxu0 %v578
          %728 = vmatprep.subr.mxu0 0.0
          %729 = vmatpush1.xpose.msra.mxu0 %v577
          %730 = vmatprep.subr.mxu0 0.0
          %731 = vmatpush1.xpose.msra.mxu0 %v576
          %732 = vmatprep.subr.mxu0 0.0
          %733 = vmatpush1.xpose.msra.mxu0 %v575
          %734 = vmatprep.subr.mxu0 0.0
          %735 = vmatpush1.xpose.msra.mxu0 %v574
          %736 = vmatprep.subr.mxu0 0.0
          %737 = vmatpush1.xpose.msra.mxu0 %v573
          %738 = vmatprep.subr.mxu0 0.0
          %739 = vmatpush1.xpose.msra.mxu0 %v572
          %740 = vmatprep.subr.mxu0 0.0
          %741 = vmatpush1.xpose.msra.mxu0 %v571
          %742 = vmatprep.subr.mxu0 0.0
          %743 = vmatpush1.xpose.msra.mxu0 %v570
          %744 = vmatprep.subr.mxu0 0.0
          %745 = vmatpush1.xpose.msra.mxu0 %v569
          %746 = vmatprep.subr.mxu0 0.0
          %747 = vmatpush1.xpose.msra.mxu0 %v568
          %748 = vmatprep.subr.mxu0 0.0
          %749 = vmatpush1.xpose.msra.mxu0 %v567
          %750 = vmatprep.subr.mxu0 0.0
          %751 = vmatpush1.xpose.msra.mxu0 %v566
          %752 = vmatprep.subr.mxu0 0.0
          %753 = vmatpush2.xpose.msra.mxu0 0.0
          %754 = vmatprep.subr.mxu0 0.0
          %755 = vmatpush2.xpose.msra.mxu0 0.0
          %756 = vmatprep.subr.mxu0 0.0
          %757 = vmatpush2.xpose.msra.mxu0 0.0
          %758 = vmatprep.subr.mxu0 0.0
          %759 = vmatpush2.xpose.msra.mxu0 0.0
          %760 = vmatprep.subr.mxu0 0.0
          %761 = vmatpush2.xpose.msra.mxu0 0.0
          %762 = vmatprep.subr.mxu0 0.0
          %763 = vmatpush2.xpose.msra.mxu0 0.0
          %764 = vmatprep.subr.mxu0 0.0
          %765 = vmatpush2.xpose.msra.mxu0 0.0
          %766 = vmatprep.subr.mxu0 0.0
          %767 = vmatpush2.xpose.msra.mxu0 0.0
          %768 = vmatprep.subr.mxu0 0.0
          %769 = vmatpush2.xpose.msra.mxu0 0.0
          %770 = vmatprep.subr.mxu0 0.0
          %771 = vmatpush2.xpose.msra.mxu0 0.0
          %772 = vmatprep.subr.mxu0 0.0
          %773 = vmatpush2.xpose.msra.mxu0 0.0
          %774 = vmatprep.subr.mxu0 0.0
          %775 = vmatpush2.xpose.msra.mxu0 0.0
          %776 = vmatprep.subr.mxu0 0.0
          %777 = vmatpush2.xpose.msra.mxu0 0.0
          %778 = vmatprep.subr.mxu0 0.0
          %779 = vmatpush2.xpose.msra.mxu0 0.0
          %780 = vmatprep.subr.mxu0 0.0
          %781 = vmatpush2.xpose.msra.mxu0 0.0
          %782 = vmatprep.subr.mxu0 0.0
          %783 = vmatpush2.xpose.msra.mxu0 0.0
          %784 = vmatprep.mubr.f32.mxu0 0.0
          %785 = vmatmul.mubr.f32.gmra.mxu0 %v700
          %v786 = vpop.f32.mrf.mxu0
          %v787 = vadd.f32 0.0, %v786
          %v788 = vpop.f32.mrf.mxu0
          %789 = vdwg.mxu0
          %v790 = vadd.f32 %v719, %v787
          %791 = vst [vmem:[#allocation4] sm:$0x1] %v790
          %v792 = vld [vmem:[#allocation5] sm:$0x1]
          %793 = vmatprep.subr.mxu0 0.0
          %794 = vmatpush1.xpose.msra.mxu0 %v581
          %795 = vmatprep.subr.mxu0 0.0
          %796 = vmatpush1.xpose.msra.mxu0 %v580
          %797 = vmatprep.subr.mxu0 0.0
          %798 = vmatpush1.xpose.msra.mxu0 %v579
          %799 = vmatprep.subr.mxu0 0.0
          %800 = vmatpush1.xpose.msra.mxu0 %v578
          %801 = vmatprep.subr.mxu0 0.0
          %802 = vmatpush1.xpose.msra.mxu0 %v577
          %803 = vmatprep.subr.mxu0 0.0
          %804 = vmatpush1.xpose.msra.mxu0 %v576
          %805 = vmatprep.subr.mxu0 0.0
          %806 = vmatpush1.xpose.msra.mxu0 %v575
          %807 = vmatprep.subr.mxu0 0.0
          %808 = vmatpush1.xpose.msra.mxu0 %v574
          %809 = vmatprep.subr.mxu0 0.0
          %810 = vmatpush1.xpose.msra.mxu0 %v573
          %811 = vmatprep.subr.mxu0 0.0
          %812 = vmatpush1.xpose.msra.mxu0 %v572
          %813 = vmatprep.subr.mxu0 0.0
          %814 = vmatpush1.xpose.msra.mxu0 %v571
          %815 = vmatprep.subr.mxu0 0.0
          %816 = vmatpush1.xpose.msra.mxu0 %v570
          %817 = vmatprep.subr.mxu0 0.0
          %818 = vmatpush1.xpose.msra.mxu0 %v569
          %819 = vmatprep.subr.mxu0 0.0
          %820 = vmatpush1.xpose.msra.mxu0 %v568
          %821 = vmatprep.subr.mxu0 0.0
          %822 = vmatpush1.xpose.msra.mxu0 %v567
          %823 = vmatprep.subr.mxu0 0.0
          %824 = vmatpush1.xpose.msra.mxu0 %v566
          %825 = vmatprep.subr.mxu0 0.0
          %826 = vmatpush2.xpose.msra.mxu0 0.0
          %827 = vmatprep.subr.mxu0 0.0
          %828 = vmatpush2.xpose.msra.mxu0 0.0
          %829 = vmatprep.subr.mxu0 0.0
          %830 = vmatpush2.xpose.msra.mxu0 0.0
          %831 = vmatprep.subr.mxu0 0.0
          %832 = vmatpush2.xpose.msra.mxu0 0.0
          %833 = vmatprep.subr.mxu0 0.0
          %834 = vmatpush2.xpose.msra.mxu0 0.0
          %835 = vmatprep.subr.mxu0 0.0
          %836 = vmatpush2.xpose.msra.mxu0 0.0
          %837 = vmatprep.subr.mxu0 0.0
          %838 = vmatpush2.xpose.msra.mxu0 0.0
          %839 = vmatprep.subr.mxu0 0.0
          %840 = vmatpush2.xpose.msra.mxu0 0.0
          %841 = vmatprep.subr.mxu0 0.0
          %842 = vmatpush2.xpose.msra.mxu0 0.0
          %843 = vmatprep.subr.mxu0 0.0
          %844 = vmatpush2.xpose.msra.mxu0 0.0
          %845 = vmatprep.subr.mxu0 0.0
          %846 = vmatpush2.xpose.msra.mxu0 0.0
          %847 = vmatprep.subr.mxu0 0.0
          %848 = vmatpush2.xpose.msra.mxu0 0.0
          %849 = vmatprep.subr.mxu0 0.0
          %850 = vmatpush2.xpose.msra.mxu0 0.0
          %851 = vmatprep.subr.mxu0 0.0
          %852 = vmatpush2.xpose.msra.mxu0 0.0
          %853 = vmatprep.subr.mxu0 0.0
          %854 = vmatpush2.xpose.msra.mxu0 0.0
          %855 = vmatprep.subr.mxu0 0.0
          %856 = vmatpush2.xpose.msra.mxu0 0.0
          %857 = vmatprep.mubr.f32.mxu0 0.0
          %858 = vmatmul.mubr.f32.gmra.mxu0 1.0
          %v859 = vpop.f32.mrf.mxu0
          %v860 = vadd.f32 0.0, %v859
          %v861 = vpop.f32.mrf.mxu0
          %862 = vdwg.mxu0
          %v863 = vadd.f32 %v792, %v860
          %864 = vst [vmem:[#allocation5] sm:$0x1] %v863
          %865 = vst.msk [vmem:[#allocation2] sm:$0x1] %vm707, %v685
          %p866 = scmp.eq.s32.totalorder %s34, 1
          // Predicated region
          $region119: #{tpu_custom_call.1} parent=113 // pred_check
            %p867 = pneg %p866
          $region120: #{tpu_custom_call.1} parent=113 // pred_check_branch
            %869 = sbr.rel (%p867) target = $region122
          $region121: #{tpu_custom_call.1} parent=113 // pred_region
            %v870 = vld [vmem:[#allocation4] sm:$0x1]
            %v871 = vld [vmem:[#allocation3] sm:$0x1]
            %873 = vset.pattern.permute.xlu0 0
            %874 = vperm.xlu0 %873, %v871
            %v875 = vpop.permute.xlu0 %874
            %v877 = vlaneseq
            %v878 = vshrl.u32 %v877, 7
            %v879 = vsub.s32 0, %v878
            %v880 = vrot.slane %v875, %v879
            %v881 = vrcp.pop %v880
            %v882 = vmul.f32 %v870, %v881
            %v883 = vld [vmem:[#allocation5] sm:$0x1]
            %v884 = vld [vmem:[%s2] sm:$0xff]
            %v885 = vld [vmem:[%s2 + $0x8] sm:$0xff]
            %v886 = vld [vmem:[%s2 + $0x10] sm:$0xff]
            %v887 = vld [vmem:[%s2 + $0x18] sm:$0xff]
            %v888 = vld [vmem:[%s2 + $0x20] sm:$0xff]
            %v889 = vld [vmem:[%s2 + $0x28] sm:$0xff]
            %v890 = vld [vmem:[%s2 + $0x30] sm:$0xff]
            %v891 = vld [vmem:[%s2 + $0x38] sm:$0xff]
            %v892 = vld [vmem:[%s2 + $0x40] sm:$0xff]
            %v893 = vld [vmem:[%s2 + $0x48] sm:$0xff]
            %v894 = vld [vmem:[%s2 + $0x50] sm:$0xff]
            %v895 = vld [vmem:[%s2 + $0x58] sm:$0xff]
            %v896 = vld [vmem:[%s2 + $0x60] sm:$0xff]
            %v897 = vld [vmem:[%s2 + $0x68] sm:$0xff]
            %v898 = vld [vmem:[%s2 + $0x70] sm:$0xff]
            %v899 = vld [vmem:[%s2 + $0x78] sm:$0xff]
            %v900 = vld [vmem:[%s3] sm:$0x1]
            %901 = vmatprep.subr.mxu0 0.0
            %902 = vmatpush1.msra.mxu0 %v899
            %903 = vmatprep.subr.mxu0 0.0
            %904 = vmatpush1.msra.mxu0 %v898
            %905 = vmatprep.subr.mxu0 0.0
            %906 = vmatpush1.msra.mxu0 %v897
            %907 = vmatprep.subr.mxu0 0.0
            %908 = vmatpush1.msra.mxu0 %v896
            %909 = vmatprep.subr.mxu0 0.0
            %910 = vmatpush1.msra.mxu0 %v895
            %911 = vmatprep.subr.mxu0 0.0
            %912 = vmatpush1.msra.mxu0 %v894
            %913 = vmatprep.subr.mxu0 0.0
            %914 = vmatpush1.msra.mxu0 %v893
            %915 = vmatprep.subr.mxu0 0.0
            %916 = vmatpush1.msra.mxu0 %v892
            %917 = vmatprep.subr.mxu0 0.0
            %918 = vmatpush1.msra.mxu0 %v891
            %919 = vmatprep.subr.mxu0 0.0
            %920 = vmatpush1.msra.mxu0 %v890
            %921 = vmatprep.subr.mxu0 0.0
            %922 = vmatpush1.msra.mxu0 %v889
            %923 = vmatprep.subr.mxu0 0.0
            %924 = vmatpush1.msra.mxu0 %v888
            %925 = vmatprep.subr.mxu0 0.0
            %926 = vmatpush1.msra.mxu0 %v887
            %927 = vmatprep.subr.mxu0 0.0
            %928 = vmatpush1.msra.mxu0 %v886
            %929 = vmatprep.subr.mxu0 0.0
            %930 = vmatpush1.msra.mxu0 %v885
            %931 = vmatprep.subr.mxu0 0.0
            %932 = vmatpush1.msra.mxu0 %v884
            %933 = vmatprep.subr.mxu0 0.0
            %934 = vmatpush2.msra.mxu0 0.0
            %935 = vmatprep.subr.mxu0 0.0
            %936 = vmatpush2.msra.mxu0 0.0
            %937 = vmatprep.subr.mxu0 0.0
            %938 = vmatpush2.msra.mxu0 0.0
            %939 = vmatprep.subr.mxu0 0.0
            %940 = vmatpush2.msra.mxu0 0.0
            %941 = vmatprep.subr.mxu0 0.0
            %942 = vmatpush2.msra.mxu0 0.0
            %943 = vmatprep.subr.mxu0 0.0
            %944 = vmatpush2.msra.mxu0 0.0
            %945 = vmatprep.subr.mxu0 0.0
            %946 = vmatpush2.msra.mxu0 0.0
            %947 = vmatprep.subr.mxu0 0.0
            %948 = vmatpush2.msra.mxu0 0.0
            %949 = vmatprep.subr.mxu0 0.0
            %950 = vmatpush2.msra.mxu0 0.0
            %951 = vmatprep.subr.mxu0 0.0
            %952 = vmatpush2.msra.mxu0 0.0
            %953 = vmatprep.subr.mxu0 0.0
            %954 = vmatpush2.msra.mxu0 0.0
            %955 = vmatprep.subr.mxu0 0.0
            %956 = vmatpush2.msra.mxu0 0.0
            %957 = vmatprep.subr.mxu0 0.0
            %958 = vmatpush2.msra.mxu0 0.0
            %959 = vmatprep.subr.mxu0 0.0
            %960 = vmatpush2.msra.mxu0 0.0
            %961 = vmatprep.subr.mxu0 0.0
            %962 = vmatpush2.msra.mxu0 0.0
            %963 = vmatprep.subr.mxu0 0.0
            %964 = vmatpush2.msra.mxu0 0.0
            %965 = vmatprep.mubr.f32.mxu0 0.0
            %966 = vmatmul.mubr.f32.gmra.mxu0 %v882
            %v967 = vpop.f32.mrf.mxu0
            %v968 = vadd.f32 %v900, %v967
            %v969 = vpop.f32.mrf.mxu0
            %970 = vdwg.mxu0
            %v971 = vld [vmem:[#allocation11] sm:$0xff]
            %v972 = vld [vmem:[#allocation11 + $0x8] sm:$0xff]
            %v973 = vld [vmem:[#allocation11 + $0x10] sm:$0xff]
            %v974 = vld [vmem:[#allocation11 + $0x18] sm:$0xff]
            %v975 = vld [vmem:[#allocation11 + $0x20] sm:$0xff]
            %v976 = vld [vmem:[#allocation11 + $0x28] sm:$0xff]
            %v977 = vld [vmem:[#allocation11 + $0x30] sm:$0xff]
            %v978 = vld [vmem:[#allocation11 + $0x38] sm:$0xff]
            %v979 = vld [vmem:[%s5] sm:$0x1]
            %vm980 = vcmask 523264
            %v982 = vsel %vm980, %v968, 0
            %984 = vmatprep.subr.mxu0 0.0
            %985 = vmatpush1.msra.mxu0 0.0
            %986 = vmatprep.subr.mxu0 0.0
            %987 = vmatpush1.msra.mxu0 0.0
            %988 = vmatprep.subr.mxu0 0.0
            %989 = vmatpush1.msra.mxu0 0.0
            %990 = vmatprep.subr.mxu0 0.0
            %991 = vmatpush1.msra.mxu0 0.0
            %992 = vmatprep.subr.mxu0 0.0
            %993 = vmatpush1.msra.mxu0 0.0
            %994 = vmatprep.subr.mxu0 0.0
            %995 = vmatpush1.msra.mxu0 0.0
            %996 = vmatprep.subr.mxu0 0.0
            %997 = vmatpush1.msra.mxu0 0.0
            %998 = vmatprep.subr.mxu0 0.0
            %999 = vmatpush1.msra.mxu0 0.0
            %1000 = vmatprep.subr.mxu0 0.0
            %1001 = vmatpush1.msra.mxu0 %v978
            %1002 = vmatprep.subr.mxu0 0.0
            %1003 = vmatpush1.msra.mxu0 %v977
            %1004 = vmatprep.subr.mxu0 0.0
            %1005 = vmatpush1.msra.mxu0 %v976
            %1006 = vmatprep.subr.mxu0 0.0
            %1007 = vmatpush1.msra.mxu0 %v975
            %1008 = vmatprep.subr.mxu0 0.0
            %1009 = vmatpush1.msra.mxu0 %v974
            %1010 = vmatprep.subr.mxu0 0.0
            %1011 = vmatpush1.msra.mxu0 %v973
            %1012 = vmatprep.subr.mxu0 0.0
            %1013 = vmatpush1.msra.mxu0 %v972
            %1014 = vmatprep.subr.mxu0 0.0
            %1015 = vmatpush1.msra.mxu0 %v971
            %1016 = vmatprep.subr.mxu0 0.0
            %1017 = vmatpush2.msra.mxu0 0.0
            %1018 = vmatprep.subr.mxu0 0.0
            %1019 = vmatpush2.msra.mxu0 0.0
            %1020 = vmatprep.subr.mxu0 0.0
            %1021 = vmatpush2.msra.mxu0 0.0
            %1022 = vmatprep.subr.mxu0 0.0
            %1023 = vmatpush2.msra.mxu0 0.0
            %1024 = vmatprep.subr.mxu0 0.0
            %1025 = vmatpush2.msra.mxu0 0.0
            %1026 = vmatprep.subr.mxu0 0.0
            %1027 = vmatpush2.msra.mxu0 0.0
            %1028 = vmatprep.subr.mxu0 0.0
            %1029 = vmatpush2.msra.mxu0 0.0
            %1030 = vmatprep.subr.mxu0 0.0
            %1031 = vmatpush2.msra.mxu0 0.0
            %1032 = vmatprep.subr.mxu0 0.0
            %1033 = vmatpush2.msra.mxu0 0.0
            %1034 = vmatprep.subr.mxu0 0.0
            %1035 = vmatpush2.msra.mxu0 0.0
            %1036 = vmatprep.subr.mxu0 0.0
            %1037 = vmatpush2.msra.mxu0 0.0
            %1038 = vmatprep.subr.mxu0 0.0
            %1039 = vmatpush2.msra.mxu0 0.0
            %1040 = vmatprep.subr.mxu0 0.0
            %1041 = vmatpush2.msra.mxu0 0.0
            %1042 = vmatprep.subr.mxu0 0.0
            %1043 = vmatpush2.msra.mxu0 0.0
            %1044 = vmatprep.subr.mxu0 0.0
            %1045 = vmatpush2.msra.mxu0 0.0
            %1046 = vmatprep.subr.mxu0 0.0
            %1047 = vmatpush2.msra.mxu0 0.0
            %1048 = vmatprep.mubr.f32.mxu0 0.0
            %1049 = vmatmul.mubr.f32.gmra.mxu0 %v982
            %v1050 = vpop.f32.mrf.mxu0
            %v1051 = vadd.f32 %v979, %v1050
            %v1052 = vpop.f32.mrf.mxu0
            %1053 = vdwg.mxu0
            %v1054 = vsel %vm681, %v1051, 0.0
            %1055 = vadd.xlane.f32.xlu0 %v1054
            %v1056 = vpop.xlane.xlu0 %1055
            %v1057 = vrcp.pop 128.0
            %v1058 = vmul.f32 %v1056, %v1057
            %v1059 = vsub.f32 %v1051, %v1058
            %v1060 = vmul.f32 %v1059, %v1059
            %v1061 = vsel %vm681, %v1060, 0.0
            %1062 = vadd.xlane.f32.xlu0 %v1061
            %v1063 = vpop.xlane.xlu0 %1062
            %v1064 = vmul.f32 %v1063, %v1057
            %v1065 = vadd.f32 %v1064, 1e-05
            %v1066 = vrsqrt.pop %v1065
            %v1067 = vmul.f32 %v1059, %v1066
            %v1068 = vld [vmem:[%s6] sm:$0x1]
            %v1069 = vmul.f32 %v1067, %v1068
            %v1070 = vld [vmem:[%s7] sm:$0x1]
            %v1071 = vadd.f32 %v1069, %v1070
            %v1072 = vxor.u32 %v1071, 2147483648
            %v1073 = vmul.f32 %v1072, 1.442695
            %v1074 = vpow.pop %v1073
            %v1075 = vadd.f32 %v1074, 1.0
            %v1076 = vrcp.pop %v1075
            %v1077 = vmul.f32 1.0, %v1076
            %v1078 = vlaneseq
            %v1079 = vshrl.u32 %v1078, 7
            %v1080 = vadd.s32 %v1079, 8
            %v1081 = vadd.s32 %v1079, 16
            %v1082 = vadd.s32 %v1079, 24
            %v1083 = vadd.s32 %v1079, 32
            %v1084 = vadd.s32 %v1079, 40
            %v1085 = vadd.s32 %v1079, 48
            %v1086 = vadd.s32 %v1079, 56
            %v1087 = vadd.s32 %v1079, 64
            %v1088 = vadd.s32 %v1079, 72
            %v1089 = vadd.s32 %v1079, 80
            %v1090 = vadd.s32 %v1079, 88
            %v1091 = vadd.s32 %v1079, 96
            %v1092 = vadd.s32 %v1079, 104
            %v1093 = vadd.s32 %v1079, 112
            %v1094 = vadd.s32 %v1079, 120
            %v1095 = vlaneseq
            %v1096 = vand.u32 %v1095, 127
            %vm1097 = vcmp.eq.s32.totalorder %v1079, %v1096
            %vm1098 = vcmp.eq.s32.totalorder %v1080, %v1096
            %vm1099 = vcmp.eq.s32.totalorder %v1081, %v1096
            %vm1100 = vcmp.eq.s32.totalorder %v1082, %v1096
            %vm1101 = vcmp.eq.s32.totalorder %v1083, %v1096
            %vm1102 = vcmp.eq.s32.totalorder %v1084, %v1096
            %vm1103 = vcmp.eq.s32.totalorder %v1085, %v1096
            %vm1104 = vcmp.eq.s32.totalorder %v1086, %v1096
            %vm1105 = vcmp.eq.s32.totalorder %v1087, %v1096
            %vm1106 = vcmp.eq.s32.totalorder %v1088, %v1096
            %vm1107 = vcmp.eq.s32.totalorder %v1089, %v1096
            %vm1108 = vcmp.eq.s32.totalorder %v1090, %v1096
            %vm1109 = vcmp.eq.s32.totalorder %v1091, %v1096
            %vm1110 = vcmp.eq.s32.totalorder %v1092, %v1096
            %vm1111 = vcmp.eq.s32.totalorder %v1093, %v1096
            %vm1112 = vcmp.eq.s32.totalorder %v1094, %v1096
            %v1113 = vsel %vm1097, 1, 0
            %v1114 = vsel %vm1098, 1, 0
            %v1115 = vsel %vm1099, 1, 0
            %v1116 = vsel %vm1100, 1, 0
            %v1117 = vsel %vm1101, 1, 0
            %v1118 = vsel %vm1102, 1, 0
            %v1119 = vsel %vm1103, 1, 0
            %v1120 = vsel %vm1104, 1, 0
            %v1121 = vsel %vm1105, 1, 0
            %v1122 = vsel %vm1106, 1, 0
            %v1123 = vsel %vm1107, 1, 0
            %v1124 = vsel %vm1108, 1, 0
            %v1125 = vsel %vm1109, 1, 0
            %v1126 = vsel %vm1110, 1, 0
            %v1127 = vsel %vm1111, 1, 0
            %v1128 = vsel %vm1112, 1, 0
            %v1129 = vcvt.s32.f32 %v1113
            %v1130 = vcvt.s32.f32 %v1114
            %v1131 = vcvt.s32.f32 %v1115
            %v1132 = vcvt.s32.f32 %v1116
            %v1133 = vcvt.s32.f32 %v1117
            %v1134 = vcvt.s32.f32 %v1118
            %v1135 = vcvt.s32.f32 %v1119
            %v1136 = vcvt.s32.f32 %v1120
            %v1137 = vcvt.s32.f32 %v1121
            %v1138 = vcvt.s32.f32 %v1122
            %v1139 = vcvt.s32.f32 %v1123
            %v1140 = vcvt.s32.f32 %v1124
            %v1141 = vcvt.s32.f32 %v1125
            %v1142 = vcvt.s32.f32 %v1126
            %v1143 = vcvt.s32.f32 %v1127
            %v1144 = vcvt.s32.f32 %v1128
            %v1145 = vlaneseq
            %v1146 = vshrl.u32 %v1145, 7
            %v1147 = vsub.s32 0, %v1146
            %v1148 = vrot.slane %v1077, %v1147
            %v1149 = vmul.f32 %v1129, %v1148
            %v1150 = vmul.f32 %v1130, %v1148
            %v1151 = vmul.f32 %v1131, %v1148
            %v1152 = vmul.f32 %v1132, %v1148
            %v1153 = vmul.f32 %v1133, %v1148
            %v1154 = vmul.f32 %v1134, %v1148
            %v1155 = vmul.f32 %v1135, %v1148
            %v1156 = vmul.f32 %v1136, %v1148
            %v1157 = vmul.f32 %v1137, %v1148
            %v1158 = vmul.f32 %v1138, %v1148
            %v1159 = vmul.f32 %v1139, %v1148
            %v1160 = vmul.f32 %v1140, %v1148
            %v1161 = vmul.f32 %v1141, %v1148
            %v1162 = vmul.f32 %v1142, %v1148
            %v1163 = vmul.f32 %v1143, %v1148
            %v1164 = vmul.f32 %v1144, %v1148
            %1165 = vadd.xlane.f32.xlu0 %v1149
            %v1166 = vpop.xlane.xlu0 %1165
            %1167 = vadd.xlane.f32.xlu0 %v1150
            %v1168 = vpop.xlane.xlu0 %1167
            %1169 = vadd.xlane.f32.xlu0 %v1151
            %v1170 = vpop.xlane.xlu0 %1169
            %1171 = vadd.xlane.f32.xlu0 %v1152
            %v1172 = vpop.xlane.xlu0 %1171
            %1173 = vadd.xlane.f32.xlu0 %v1153
            %v1174 = vpop.xlane.xlu0 %1173
            %1175 = vadd.xlane.f32.xlu0 %v1154
            %v1176 = vpop.xlane.xlu0 %1175
            %1177 = vadd.xlane.f32.xlu0 %v1155
            %v1178 = vpop.xlane.xlu0 %1177
            %1179 = vadd.xlane.f32.xlu0 %v1156
            %v1180 = vpop.xlane.xlu0 %1179
            %1181 = vadd.xlane.f32.xlu0 %v1157
            %v1182 = vpop.xlane.xlu0 %1181
            %1183 = vadd.xlane.f32.xlu0 %v1158
            %v1184 = vpop.xlane.xlu0 %1183
            %1185 = vadd.xlane.f32.xlu0 %v1159
            %v1186 = vpop.xlane.xlu0 %1185
            %1187 = vadd.xlane.f32.xlu0 %v1160
            %v1188 = vpop.xlane.xlu0 %1187
            %1189 = vadd.xlane.f32.xlu0 %v1161
            %v1190 = vpop.xlane.xlu0 %1189
            %1191 = vadd.xlane.f32.xlu0 %v1162
            %v1192 = vpop.xlane.xlu0 %1191
            %1193 = vadd.xlane.f32.xlu0 %v1163
            %v1194 = vpop.xlane.xlu0 %1193
            %1195 = vadd.xlane.f32.xlu0 %v1164
            %v1196 = vpop.xlane.xlu0 %1195
            %vm1197 = vcmask 7168
            %1198 = vst.msk [vmem:[#allocation6] sm:$0xff] %vm1197, %v1166
            %1199 = vst.msk [vmem:[#allocation6 + $0x8] sm:$0xff] %vm1197, %v1168
            %1200 = vst.msk [vmem:[#allocation6 + $0x10] sm:$0xff] %vm1197, %v1170
            %1201 = vst.msk [vmem:[#allocation6 + $0x18] sm:$0xff] %vm1197, %v1172
            %1202 = vst.msk [vmem:[#allocation6 + $0x20] sm:$0xff] %vm1197, %v1174
            %1203 = vst.msk [vmem:[#allocation6 + $0x28] sm:$0xff] %vm1197, %v1176
            %1204 = vst.msk [vmem:[#allocation6 + $0x30] sm:$0xff] %vm1197, %v1178
            %1205 = vst.msk [vmem:[#allocation6 + $0x38] sm:$0xff] %vm1197, %v1180
            %1206 = vst.msk [vmem:[#allocation6 + $0x40] sm:$0xff] %vm1197, %v1182
            %1207 = vst.msk [vmem:[#allocation6 + $0x48] sm:$0xff] %vm1197, %v1184
            %1208 = vst.msk [vmem:[#allocation6 + $0x50] sm:$0xff] %vm1197, %v1186
            %1209 = vst.msk [vmem:[#allocation6 + $0x58] sm:$0xff] %vm1197, %v1188
            %1210 = vst.msk [vmem:[#allocation6 + $0x60] sm:$0xff] %vm1197, %v1190
            %1211 = vst.msk [vmem:[#allocation6 + $0x68] sm:$0xff] %vm1197, %v1192
            %1212 = vst.msk [vmem:[#allocation6 + $0x70] sm:$0xff] %vm1197, %v1194
            %1213 = vst.msk [vmem:[#allocation6 + $0x78] sm:$0xff] %vm1197, %v1196
            %v1214 = vmul.f32 %v1077, %v883
            %v1215 = vmul.f32 %v1214, 0.00390625
            %v1216 = vld [vmem:[%s8] sm:$0xff]
            %v1217 = vld [vmem:[%s8 + $0x8] sm:$0xff]
            %v1218 = vld [vmem:[%s8 + $0x10] sm:$0xff]
            %v1219 = vld [vmem:[%s8 + $0x18] sm:$0xff]
            %v1220 = vld [vmem:[%s8 + $0x20] sm:$0xff]
            %v1221 = vld [vmem:[%s8 + $0x28] sm:$0xff]
            %v1222 = vld [vmem:[%s8 + $0x30] sm:$0xff]
            %v1223 = vld [vmem:[%s8 + $0x38] sm:$0xff]
            %v1224 = vld [vmem:[%s8 + $0x40] sm:$0xff]
            %v1225 = vld [vmem:[%s8 + $0x48] sm:$0xff]
            %v1226 = vld [vmem:[%s8 + $0x50] sm:$0xff]
            %v1227 = vld [vmem:[%s8 + $0x58] sm:$0xff]
            %v1228 = vld [vmem:[%s8 + $0x60] sm:$0xff]
            %v1229 = vld [vmem:[%s8 + $0x68] sm:$0xff]
            %v1230 = vld [vmem:[%s8 + $0x70] sm:$0xff]
            %v1231 = vld [vmem:[%s8 + $0x78] sm:$0xff]
            %v1232 = vld [vmem:[%s9] sm:$0x1]
            %1233 = vmatprep.subr.mxu0 0.0
            %1234 = vmatpush1.msra.mxu0 %v1231
            %1235 = vmatprep.subr.mxu0 0.0
            %1236 = vmatpush1.msra.mxu0 %v1230
            %1237 = vmatprep.subr.mxu0 0.0
            %1238 = vmatpush1.msra.mxu0 %v1229
            %1239 = vmatprep.subr.mxu0 0.0
            %1240 = vmatpush1.msra.mxu0 %v1228
            %1241 = vmatprep.subr.mxu0 0.0
            %1242 = vmatpush1.msra.mxu0 %v1227
            %1243 = vmatprep.subr.mxu0 0.0
            %1244 = vmatpush1.msra.mxu0 %v1226
            %1245 = vmatprep.subr.mxu0 0.0
            %1246 = vmatpush1.msra.mxu0 %v1225
            %1247 = vmatprep.subr.mxu0 0.0
            %1248 = vmatpush1.msra.mxu0 %v1224
            %1249 = vmatprep.subr.mxu0 0.0
            %1250 = vmatpush1.msra.mxu0 %v1223
            %1251 = vmatprep.subr.mxu0 0.0
            %1252 = vmatpush1.msra.mxu0 %v1222
            %1253 = vmatprep.subr.mxu0 0.0
            %1254 = vmatpush1.msra.mxu0 %v1221
            %1255 = vmatprep.subr.mxu0 0.0
            %1256 = vmatpush1.msra.mxu0 %v1220
            %1257 = vmatprep.subr.mxu0 0.0
            %1258 = vmatpush1.msra.mxu0 %v1219
            %1259 = vmatprep.subr.mxu0 0.0
            %1260 = vmatpush1.msra.mxu0 %v1218
            %1261 = vmatprep.subr.mxu0 0.0
            %1262 = vmatpush1.msra.mxu0 %v1217
            %1263 = vmatprep.subr.mxu0 0.0
            %1264 = vmatpush1.msra.mxu0 %v1216
            %1265 = vmatprep.subr.mxu0 0.0
            %1266 = vmatpush2.msra.mxu0 0.0
            %1267 = vmatprep.subr.mxu0 0.0
            %1268 = vmatpush2.msra.mxu0 0.0
            %1269 = vmatprep.subr.mxu0 0.0
            %1270 = vmatpush2.msra.mxu0 0.0
            %1271 = vmatprep.subr.mxu0 0.0
            %1272 = vmatpush2.msra.mxu0 0.0
            %1273 = vmatprep.subr.mxu0 0.0
            %1274 = vmatpush2.msra.mxu0 0.0
            %1275 = vmatprep.subr.mxu0 0.0
            %1276 = vmatpush2.msra.mxu0 0.0
            %1277 = vmatprep.subr.mxu0 0.0
            %1278 = vmatpush2.msra.mxu0 0.0
            %1279 = vmatprep.subr.mxu0 0.0
            %1280 = vmatpush2.msra.mxu0 0.0
            %1281 = vmatprep.subr.mxu0 0.0
            %1282 = vmatpush2.msra.mxu0 0.0
            %1283 = vmatprep.subr.mxu0 0.0
            %1284 = vmatpush2.msra.mxu0 0.0
            %1285 = vmatprep.subr.mxu0 0.0
            %1286 = vmatpush2.msra.mxu0 0.0
            %1287 = vmatprep.subr.mxu0 0.0
            %1288 = vmatpush2.msra.mxu0 0.0
            %1289 = vmatprep.subr.mxu0 0.0
            %1290 = vmatpush2.msra.mxu0 0.0
            %1291 = vmatprep.subr.mxu0 0.0
            %1292 = vmatpush2.msra.mxu0 0.0
            %1293 = vmatprep.subr.mxu0 0.0
            %1294 = vmatpush2.msra.mxu0 0.0
            %1295 = vmatprep.subr.mxu0 0.0
            %1296 = vmatpush2.msra.mxu0 0.0
            %1297 = vmatprep.mubr.f32.mxu0 0.0
            %1298 = vmatmul.mubr.f32.gmra.mxu0 %v1215
            %v1299 = vpop.f32.mrf.mxu0
            %v1300 = vadd.f32 %v1232, %v1299
            %v1301 = vpop.f32.mrf.mxu0
            %1302 = vdwg.mxu0
            %vm1303 = vcmask 516096
            %v1304 = vsel %vm1303, %v1300, -inf
            %1305 = vmax.xlane.f32.xlu0 %v1304
            %v1306 = vpop.xlane.xlu0 %1305
            %v1307 = vsub.f32 %v1300, %v1306
            %v1308 = vmul.f32 %v1307, 1.442695
            %v1309 = vpow.pop %v1308
            %v1310 = vsel %vm1303, %v1309, 0.0
            %1311 = vadd.xlane.f32.xlu0 %v1310
            %v1312 = vpop.xlane.xlu0 %1311
            %v1313 = vrcp.pop %v1312
            %v1314 = vmul.f32 %v1309, %v1313
            %v1315 = vld [vmem:[%s10] sm:$0xff]
            %v1316 = vld [vmem:[%s10 + $0x8] sm:$0xff]
            %v1317 = vld [vmem:[%s10 + $0x10] sm:$0xff]
            %v1318 = vld [vmem:[%s10 + $0x18] sm:$0xff]
            %v1319 = vld [vmem:[%s10 + $0x20] sm:$0xff]
            %v1320 = vld [vmem:[%s10 + $0x28] sm:$0xff]
            %v1321 = vld [vmem:[%s10 + $0x30] sm:$0xff]
            %v1322 = vld [vmem:[%s10 + $0x38] sm:$0xff]
            %v1323 = vld [vmem:[%s10 + $0x40] sm:$0xff]
            %v1324 = vld [vmem:[%s10 + $0x48] sm:$0xff]
            %v1325 = vld [vmem:[%s10 + $0x50] sm:$0xff]
            %v1326 = vld [vmem:[%s10 + $0x58] sm:$0xff]
            %v1327 = vld [vmem:[%s10 + $0x60] sm:$0xff]
            %v1328 = vld [vmem:[%s10 + $0x68] sm:$0xff]
            %v1329 = vld [vmem:[%s10 + $0x70] sm:$0xff]
            %v1330 = vld [vmem:[%s10 + $0x78] sm:$0xff]
            %v1332 = vsel %vm980, %v1314, 0
            %v1335 = vsel %vm980, %v1315, 0
            %v1338 = vsel %vm980, %v1316, 0
            %v1341 = vsel %vm980, %v1317, 0
            %v1344 = vsel %vm980, %v1318, 0
            %v1347 = vsel %vm980, %v1319, 0
            %v1350 = vsel %vm980, %v1320, 0
            %v1353 = vsel %vm980, %v1321, 0
            %v1356 = vsel %vm980, %v1322, 0
            %v1359 = vsel %vm980, %v1323, 0
            %v1362 = vsel %vm980, %v1324, 0
            %v1365 = vsel %vm980, %v1325, 0
            %v1368 = vsel %vm980, %v1326, 0
            %v1371 = vsel %vm980, %v1327, 0
            %v1374 = vsel %vm980, %v1328, 0
            %v1377 = vsel %vm980, %v1329, 0
            %v1380 = vsel %vm980, %v1330, 0
            %1382 = vmatprep.subr.mxu0 0.0
            %1383 = vmatpush1.xpose.msra.mxu0 %v1380
            %1384 = vmatprep.subr.mxu0 0.0
            %1385 = vmatpush1.xpose.msra.mxu0 %v1377
            %1386 = vmatprep.subr.mxu0 0.0
            %1387 = vmatpush1.xpose.msra.mxu0 %v1374
            %1388 = vmatprep.subr.mxu0 0.0
            %1389 = vmatpush1.xpose.msra.mxu0 %v1371
            %1390 = vmatprep.subr.mxu0 0.0
            %1391 = vmatpush1.xpose.msra.mxu0 %v1368
            %1392 = vmatprep.subr.mxu0 0.0
            %1393 = vmatpush1.xpose.msra.mxu0 %v1365
            %1394 = vmatprep.subr.mxu0 0.0
            %1395 = vmatpush1.xpose.msra.mxu0 %v1362
            %1396 = vmatprep.subr.mxu0 0.0
            %1397 = vmatpush1.xpose.msra.mxu0 %v1359
            %1398 = vmatprep.subr.mxu0 0.0
            %1399 = vmatpush1.xpose.msra.mxu0 %v1356
            %1400 = vmatprep.subr.mxu0 0.0
            %1401 = vmatpush1.xpose.msra.mxu0 %v1353
            %1402 = vmatprep.subr.mxu0 0.0
            %1403 = vmatpush1.xpose.msra.mxu0 %v1350
            %1404 = vmatprep.subr.mxu0 0.0
            %1405 = vmatpush1.xpose.msra.mxu0 %v1347
            %1406 = vmatprep.subr.mxu0 0.0
            %1407 = vmatpush1.xpose.msra.mxu0 %v1344
            %1408 = vmatprep.subr.mxu0 0.0
            %1409 = vmatpush1.xpose.msra.mxu0 %v1341
            %1410 = vmatprep.subr.mxu0 0.0
            %1411 = vmatpush1.xpose.msra.mxu0 %v1338
            %1412 = vmatprep.subr.mxu0 0.0
            %1413 = vmatpush1.xpose.msra.mxu0 %v1335
            %1414 = vmatprep.subr.mxu0 0.0
            %1415 = vmatpush2.xpose.msra.mxu0 0.0
            %1416 = vmatprep.subr.mxu0 0.0
            %1417 = vmatpush2.xpose.msra.mxu0 0.0
            %1418 = vmatprep.subr.mxu0 0.0
            %1419 = vmatpush2.xpose.msra.mxu0 0.0
            %1420 = vmatprep.subr.mxu0 0.0
            %1421 = vmatpush2.xpose.msra.mxu0 0.0
            %1422 = vmatprep.subr.mxu0 0.0
            %1423 = vmatpush2.xpose.msra.mxu0 0.0
            %1424 = vmatprep.subr.mxu0 0.0
            %1425 = vmatpush2.xpose.msra.mxu0 0.0
            %1426 = vmatprep.subr.mxu0 0.0
            %1427 = vmatpush2.xpose.msra.mxu0 0.0
            %1428 = vmatprep.subr.mxu0 0.0
            %1429 = vmatpush2.xpose.msra.mxu0 0.0
            %1430 = vmatprep.subr.mxu0 0.0
            %1431 = vmatpush2.xpose.msra.mxu0 0.0
            %1432 = vmatprep.subr.mxu0 0.0
            %1433 = vmatpush2.xpose.msra.mxu0 0.0
            %1434 = vmatprep.subr.mxu0 0.0
            %1435 = vmatpush2.xpose.msra.mxu0 0.0
            %1436 = vmatprep.subr.mxu0 0.0
            %1437 = vmatpush2.xpose.msra.mxu0 0.0
            %1438 = vmatprep.subr.mxu0 0.0
            %1439 = vmatpush2.xpose.msra.mxu0 0.0
            %1440 = vmatprep.subr.mxu0 0.0
            %1441 = vmatpush2.xpose.msra.mxu0 0.0
            %1442 = vmatprep.subr.mxu0 0.0
            %1443 = vmatpush2.xpose.msra.mxu0 0.0
            %1444 = vmatprep.subr.mxu0 0.0
            %1445 = vmatpush2.xpose.msra.mxu0 0.0
            %1446 = vmatprep.mubr.f32.mxu0 0.0
            %1447 = vmatmul.mubr.f32.gmra.mxu0 %v1332
            %v1448 = vpop.f32.mrf.mxu0
            %v1449 = vadd.f32 0.0, %v1448
            %v1450 = vpop.f32.mrf.mxu0
            %1451 = vdwg.mxu0
            %v1452 = vmul.f32 %v1449, %v1077
            %1453 = vst [vmem:[#allocation7] sm:$0x1] %v1452
            %v1454 = vld [vmem:[%s11] sm:$0x1]
            %v1455 = vmul.f32 %v1314, %v1454
            %v1456 = vsel %vm1303, %v1455, 0.0
            %1457 = vadd.xlane.f32.xlu0 %v1456
            %v1458 = vpop.xlane.xlu0 %1457
            %1459 = vst.msk [vmem:[#allocation8] sm:$0x1] %vm707, %v1458
          $region122: #{tpu_custom_call.1} parent=113 // pred_fallthru
            _
        $region114: #{tpu_custom_call.1} parent=101 // pred_fallthru
          _
        %p1460 = scmp.eq.s32.totalorder %s33, 1
        // Predicated region
        $region123: #{tpu_custom_call.1} parent=101 // pred_check
          %p1461 = pneg %p1460
        $region124: #{tpu_custom_call.1} parent=101 // pred_check_branch
          %1463 = sbr.rel (%p1461) target = $region126
        $region125: #{tpu_custom_call.1} parent=101 // pred_region
          %s1464 = smul.u32 %s34, 128
          %s1465 = scalar_lea.vmem [#allocation9], %s1464
          %v1466 = vld [vmem:[%s1465] sm:$0xff]
          %v1467 = vld [vmem:[%s1465 + $0x8] sm:$0xff]
          %v1468 = vld [vmem:[%s1465 + $0x10] sm:$0xff]
          %v1469 = vld [vmem:[%s1465 + $0x18] sm:$0xff]
          %v1470 = vld [vmem:[%s1465 + $0x20] sm:$0xff]
          %v1471 = vld [vmem:[%s1465 + $0x28] sm:$0xff]
          %v1472 = vld [vmem:[%s1465 + $0x30] sm:$0xff]
          %v1473 = vld [vmem:[%s1465 + $0x38] sm:$0xff]
          %v1474 = vld [vmem:[%s1465 + $0x40] sm:$0xff]
          %v1475 = vld [vmem:[%s1465 + $0x48] sm:$0xff]
          %v1476 = vld [vmem:[%s1465 + $0x50] sm:$0xff]
          %v1477 = vld [vmem:[%s1465 + $0x58] sm:$0xff]
          %v1478 = vld [vmem:[%s1465 + $0x60] sm:$0xff]
          %v1479 = vld [vmem:[%s1465 + $0x68] sm:$0xff]
          %v1480 = vld [vmem:[%s1465 + $0x70] sm:$0xff]
          %v1481 = vld [vmem:[%s1465 + $0x78] sm:$0xff]
          %v1482 = vld [vmem:[#allocation6] sm:$0xff]
          %v1483 = vld [vmem:[#allocation6 + $0x8] sm:$0xff]
          %v1484 = vld [vmem:[#allocation6 + $0x10] sm:$0xff]
          %v1485 = vld [vmem:[#allocation6 + $0x18] sm:$0xff]
          %v1486 = vld [vmem:[#allocation6 + $0x20] sm:$0xff]
          %v1487 = vld [vmem:[#allocation6 + $0x28] sm:$0xff]
          %v1488 = vld [vmem:[#allocation6 + $0x30] sm:$0xff]
          %v1489 = vld [vmem:[#allocation6 + $0x38] sm:$0xff]
          %v1490 = vld [vmem:[#allocation6 + $0x40] sm:$0xff]
          %v1491 = vld [vmem:[#allocation6 + $0x48] sm:$0xff]
          %v1492 = vld [vmem:[#allocation6 + $0x50] sm:$0xff]
          %v1493 = vld [vmem:[#allocation6 + $0x58] sm:$0xff]
          %v1494 = vld [vmem:[#allocation6 + $0x60] sm:$0xff]
          %v1495 = vld [vmem:[#allocation6 + $0x68] sm:$0xff]
          %v1496 = vld [vmem:[#allocation6 + $0x70] sm:$0xff]
          %v1497 = vld [vmem:[#allocation6 + $0x78] sm:$0xff]
          %1499 = vset.pattern.permute.xlu0 0
          %1500 = vperm.xlu0 %1499, %v1482
          %v1501 = vpop.permute.xlu0 %1500
          %1504 = vset.pattern.permute.xlu0 0
          %1505 = vperm.xlu0 %1504, %v1483
          %v1506 = vpop.permute.xlu0 %1505
          %1509 = vset.pattern.permute.xlu0 0
          %1510 = vperm.xlu0 %1509, %v1484
          %v1511 = vpop.permute.xlu0 %1510
          %1514 = vset.pattern.permute.xlu0 0
          %1515 = vperm.xlu0 %1514, %v1485
          %v1516 = vpop.permute.xlu0 %1515
          %1519 = vset.pattern.permute.xlu0 0
          %1520 = vperm.xlu0 %1519, %v1486
          %v1521 = vpop.permute.xlu0 %1520
          %1524 = vset.pattern.permute.xlu0 0
          %1525 = vperm.xlu0 %1524, %v1487
          %v1526 = vpop.permute.xlu0 %1525
          %1529 = vset.pattern.permute.xlu0 0
          %1530 = vperm.xlu0 %1529, %v1488
          %v1531 = vpop.permute.xlu0 %1530
          %1534 = vset.pattern.permute.xlu0 0
          %1535 = vperm.xlu0 %1534, %v1489
          %v1536 = vpop.permute.xlu0 %1535
          %1539 = vset.pattern.permute.xlu0 0
          %1540 = vperm.xlu0 %1539, %v1490
          %v1541 = vpop.permute.xlu0 %1540
          %1544 = vset.pattern.permute.xlu0 0
          %1545 = vperm.xlu0 %1544, %v1491
          %v1546 = vpop.permute.xlu0 %1545
          %1549 = vset.pattern.permute.xlu0 0
          %1550 = vperm.xlu0 %1549, %v1492
          %v1551 = vpop.permute.xlu0 %1550
          %1554 = vset.pattern.permute.xlu0 0
          %1555 = vperm.xlu0 %1554, %v1493
          %v1556 = vpop.permute.xlu0 %1555
          %1559 = vset.pattern.permute.xlu0 0
          %1560 = vperm.xlu0 %1559, %v1494
          %v1561 = vpop.permute.xlu0 %1560
          %1564 = vset.pattern.permute.xlu0 0
          %1565 = vperm.xlu0 %1564, %v1495
          %v1566 = vpop.permute.xlu0 %1565
          %1569 = vset.pattern.permute.xlu0 0
          %1570 = vperm.xlu0 %1569, %v1496
          %v1571 = vpop.permute.xlu0 %1570
          %1574 = vset.pattern.permute.xlu0 0
          %1575 = vperm.xlu0 %1574, %v1497
          %v1576 = vpop.permute.xlu0 %1575
          %v1578 = vmul.f32 %v1501, %v1466
          %v1579 = vmul.f32 %v1506, %v1467
          %v1580 = vmul.f32 %v1511, %v1468
          %v1581 = vmul.f32 %v1516, %v1469
          %v1582 = vmul.f32 %v1521, %v1470
          %v1583 = vmul.f32 %v1526, %v1471
          %v1584 = vmul.f32 %v1531, %v1472
          %v1585 = vmul.f32 %v1536, %v1473
          %v1586 = vmul.f32 %v1541, %v1474
          %v1587 = vmul.f32 %v1546, %v1475
          %v1588 = vmul.f32 %v1551, %v1476
          %v1589 = vmul.f32 %v1556, %v1477
          %v1590 = vmul.f32 %v1561, %v1478
          %v1591 = vmul.f32 %v1566, %v1479
          %v1592 = vmul.f32 %v1571, %v1480
          %v1593 = vmul.f32 %v1576, %v1481
          %v1594 = vld [vmem:[#allocation7] sm:$0x1]
          %v1595 = vld [vmem:[#allocation8] sm:$0x1]
          %1597 = vset.pattern.permute.xlu0 0
          %1598 = vperm.xlu0 %1597, %v1595
          %v1599 = vpop.permute.xlu0 %1598
          %v1601 = vlaneseq
          %v1602 = vshrl.u32 %v1601, 7
          %v1603 = vsub.s32 0, %v1602
          %v1604 = vrot.slane %v1599, %v1603
          %1605 = vmatprep.subr.mxu0 0.0
          %1606 = vmatpush1.msra.mxu0 %v1481
          %1607 = vmatprep.subr.mxu0 0.0
          %1608 = vmatpush1.msra.mxu0 %v1480
          %1609 = vmatprep.subr.mxu0 0.0
          %1610 = vmatpush1.msra.mxu0 %v1479
          %1611 = vmatprep.subr.mxu0 0.0
          %1612 = vmatpush1.msra.mxu0 %v1478
          %1613 = vmatprep.subr.mxu0 0.0
          %1614 = vmatpush1.msra.mxu0 %v1477
          %1615 = vmatprep.subr.mxu0 0.0
          %1616 = vmatpush1.msra.mxu0 %v1476
          %1617 = vmatprep.subr.mxu0 0.0
          %1618 = vmatpush1.msra.mxu0 %v1475
          %1619 = vmatprep.subr.mxu0 0.0
          %1620 = vmatpush1.msra.mxu0 %v1474
          %1621 = vmatprep.subr.mxu0 0.0
          %1622 = vmatpush1.msra.mxu0 %v1473
          %1623 = vmatprep.subr.mxu0 0.0
          %1624 = vmatpush1.msra.mxu0 %v1472
          %1625 = vmatprep.subr.mxu0 0.0
          %1626 = vmatpush1.msra.mxu0 %v1471
          %1627 = vmatprep.subr.mxu0 0.0
          %1628 = vmatpush1.msra.mxu0 %v1470
          %1629 = vmatprep.subr.mxu0 0.0
          %1630 = vmatpush1.msra.mxu0 %v1469
          %1631 = vmatprep.subr.mxu0 0.0
          %1632 = vmatpush1.msra.mxu0 %v1468
          %1633 = vmatprep.subr.mxu0 0.0
          %1634 = vmatpush1.msra.mxu0 %v1467
          %1635 = vmatprep.subr.mxu0 0.0
          %1636 = vmatpush1.msra.mxu0 %v1466
          %1637 = vmatprep.subr.mxu0 0.0
          %1638 = vmatpush2.msra.mxu0 0.0
          %1639 = vmatprep.subr.mxu0 0.0
          %1640 = vmatpush2.msra.mxu0 0.0
          %1641 = vmatprep.subr.mxu0 0.0
          %1642 = vmatpush2.msra.mxu0 0.0
          %1643 = vmatprep.subr.mxu0 0.0
          %1644 = vmatpush2.msra.mxu0 0.0
          %1645 = vmatprep.subr.mxu0 0.0
          %1646 = vmatpush2.msra.mxu0 0.0
          %1647 = vmatprep.subr.mxu0 0.0
          %1648 = vmatpush2.msra.mxu0 0.0
          %1649 = vmatprep.subr.mxu0 0.0
          %1650 = vmatpush2.msra.mxu0 0.0
          %1651 = vmatprep.subr.mxu0 0.0
          %1652 = vmatpush2.msra.mxu0 0.0
          %1653 = vmatprep.subr.mxu0 0.0
          %1654 = vmatpush2.msra.mxu0 0.0
          %1655 = vmatprep.subr.mxu0 0.0
          %1656 = vmatpush2.msra.mxu0 0.0
          %1657 = vmatprep.subr.mxu0 0.0
          %1658 = vmatpush2.msra.mxu0 0.0
          %1659 = vmatprep.subr.mxu0 0.0
          %1660 = vmatpush2.msra.mxu0 0.0
          %1661 = vmatprep.subr.mxu0 0.0
          %1662 = vmatpush2.msra.mxu0 0.0
          %1663 = vmatprep.subr.mxu0 0.0
          %1664 = vmatpush2.msra.mxu0 0.0
          %1665 = vmatprep.subr.mxu0 0.0
          %1666 = vmatpush2.msra.mxu0 0.0
          %1667 = vmatprep.subr.mxu0 0.0
          %1668 = vmatpush2.msra.mxu0 0.0
          %1669 = vmatprep.mubr.f32.mxu0 0.0
          %1670 = vmatmul.mubr.f32.gmra.mxu0 %v1594
          %v1671 = vpop.f32.mrf.mxu0
          %v1672 = vadd.f32 %v1604, %v1671
          %v1673 = vpop.f32.mrf.mxu0
          %1674 = vdwg.mxu0
          %v1675 = vxor.u32 %v1672, 2147483648
          %v1676 = vmul.f32 %v1675, 1.442695
          %v1677 = vpow.pop %v1676
          %v1678 = vadd.f32 %v1677, 1.0
          %v1679 = vrcp.pop %v1678
          %v1680 = vmul.f32 1.0, %v1679
          %v1681 = vlaneseq
          %v1682 = vshrl.u32 %v1681, 7
          %v1683 = vsub.s32 0, %v1682
          %v1684 = vrot.slane %v1680, %v1683
          %v1685 = vmul.f32 %v1684, %v1578
          %v1686 = vmul.f32 %v1684, %v1579
          %v1687 = vmul.f32 %v1684, %v1580
          %v1688 = vmul.f32 %v1684, %v1581
          %v1689 = vmul.f32 %v1684, %v1582
          %v1690 = vmul.f32 %v1684, %v1583
          %v1691 = vmul.f32 %v1684, %v1584
          %v1692 = vmul.f32 %v1684, %v1585
          %v1693 = vmul.f32 %v1684, %v1586
          %v1694 = vmul.f32 %v1684, %v1587
          %v1695 = vmul.f32 %v1684, %v1588
          %v1696 = vmul.f32 %v1684, %v1589
          %v1697 = vmul.f32 %v1684, %v1590
          %v1698 = vmul.f32 %v1684, %v1591
          %v1699 = vmul.f32 %v1684, %v1592
          %v1700 = vmul.f32 %v1684, %v1593
          %1701 = vst [vmem:[%s557] sm:$0xff] %v1685
          %1702 = vst [vmem:[%s557 + $0x8] sm:$0xff] %v1686
          %1703 = vst [vmem:[%s557 + $0x10] sm:$0xff] %v1687
          %1704 = vst [vmem:[%s557 + $0x18] sm:$0xff] %v1688
          %1705 = vst [vmem:[%s557 + $0x20] sm:$0xff] %v1689
          %1706 = vst [vmem:[%s557 + $0x28] sm:$0xff] %v1690
          %1707 = vst [vmem:[%s557 + $0x30] sm:$0xff] %v1691
          %1708 = vst [vmem:[%s557 + $0x38] sm:$0xff] %v1692
          %1709 = vst [vmem:[%s557 + $0x40] sm:$0xff] %v1693
          %1710 = vst [vmem:[%s557 + $0x48] sm:$0xff] %v1694
          %1711 = vst [vmem:[%s557 + $0x50] sm:$0xff] %v1695
          %1712 = vst [vmem:[%s557 + $0x58] sm:$0xff] %v1696
          %1713 = vst [vmem:[%s557 + $0x60] sm:$0xff] %v1697
          %1714 = vst [vmem:[%s557 + $0x68] sm:$0xff] %v1698
          %1715 = vst [vmem:[%s557 + $0x70] sm:$0xff] %v1699
          %1716 = vst [vmem:[%s557 + $0x78] sm:$0xff] %v1700
        $region126: #{tpu_custom_call.1} parent=101 // pred_fallthru
          _
        %s1717 = sand.u32 %s323, 1
        %s1718 = scalar_lea.sflag [#allocation13], %s1717
        %s1719 = sand.u32 %s323, 1
        %s1720 = smul.addr %s1719, 128
        %s1721 = scalar_lea.vmem [#allocation14], %s1720
        // Predicated region
        $region127: #{tpu_custom_call.1} parent=101 // pred_check
          %p1722 = pneg %p333
        $region128: #{tpu_custom_call.1} parent=101 // pred_check_branch
          %1724 = sbr.rel (%p1722) target = $region130
        $region129: #{tpu_custom_call.1} parent=101 // pred_region
          %s1725 = smul.u32 %s33, %s34
          %s1727 = ssub.s32 2048, 2048
          %1728 = vsyncadd %s1718, %s1727
          %s1729 = smul.addr %s32, 32
          %s1730 = sadd.s32 %s1725, %s1729
          %s1731 = smul.addr %s1730, 128
          %s1732 = scalar_lea.hbm %s12, %s1731
          %s1733 = sshll.u32 %s1721, 4
          %s1734 = int_to_ptr.vmem [resolvable:$true] %s1733
          %1739 = dma.vmem_to_hbm [thread:$0]  %s1734, 2048, %s1732, %s1718, 128, 256, 8
        $region130: #{tpu_custom_call.1} parent=101 // pred_fallthru
          _
      $region102: #{tpu_custom_call.1} parent=5 // pred_fallthru
        _
      %p1740 = scmp.le.s32.totalorder 2, %s22
      // Predicated region
      $region131: #{tpu_custom_call.1} parent=5 // pred_check
        %p1741 = pneg %p1740
      $region132: #{tpu_custom_call.1} parent=5 // pred_check_branch
        %1743 = sbr.rel (%p1741) target = $region134
      $region133: #{tpu_custom_call.1} parent=5 // pred_region
        %s1744 = ssub.s32 %s22, 2
        // Predicated region
        $region135: #{tpu_custom_call.1} parent=133 // pred_check
          %p1745 = pneg %p339
        $region136: #{tpu_custom_call.1} parent=133 // pred_check_branch
          %1747 = sbr.rel (%p1745) target = $region138
        $region137: #{tpu_custom_call.1} parent=133 // pred_region
          %s1748 = sand.u32 %s324, 1
          %s1749 = scalar_lea.sflag [#allocation13], %s1748
          %s1750 = sand.u32 %s324, 1
          %s1751 = smul.addr %s1750, 128
          %s1752 = scalar_lea.vmem [#allocation14], %s1751
          %1753 = dma.done %s1749, 2048
        $region138: #{tpu_custom_call.1} parent=133 // pred_fallthru
          _
      $region134: #{tpu_custom_call.1} parent=5 // pred_fallthru
        _
    $region6: #{tpu_custom_call.1} parent=1 // loop_footer
      %s26 = sadd.s32 1, %s22
    $region7: #{tpu_custom_call.1} parent=1 // loop_footer_branch
      %21 = sbr.rel target = $region3
    $region8: #{tpu_custom_call.1} parent=1 // loop_exit
      _
    %1754 = vsyncpa [#allocation12], 1
    %s1755 = scalar_lea.sflag [#allocation12], 1
    %1756 = vsyncpa %s1755, 1
    %1757 = vsyncpa [#allocation13], 1
    %s1758 = scalar_lea.sflag [#allocation13], 1
    %1759 = vsyncpa %s1758, 1

</llo_original>
